<compile_context>
chip_gen: v6e
topology: v6e:2x2x1
jax: 0.10.0
libtpu: 0.0.40
codegen_flags: <defaults>
</compile_context>

<pallas_src>
import functools
import math

import jax
import jax.numpy as jnp
from jax.experimental import pallas as pl
from jax.experimental.pallas import tpu as pltpu


def _combined_embedding_kernel(ids_ref, table_ref, pe_ref, out_ref,
                               *, scale, vocab, d_model, group):
    # ids_ref:   (NT, G)      int32  packed token ids for this row tile
    # table_ref: (V, D)       f32    full embedding table (resident in VMEM)
    # pe_ref:    (NT, G*D)    f32    packed positional-encoding rows for this tile
    # out_ref:   (NT, G*D)    f32    packed output tile (lane-dense: G*D % 128 == 0)
    tbl = table_ref[...]
    pe = pe_ref[...]
    ids = jnp.clip(ids_ref[...], 0, vocab - 1)        # guard against OOB ids
    nt = ids.shape[0]
    for g in range(group):                            # small static unroll (G = 128 // D)
        col = ids[:, g:g + 1]                         # (NT, 1)
        onehot = (col == jax.lax.broadcasted_iota(jnp.int32, (nt, vocab), 1)
                  ).astype(tbl.dtype)                 # (NT, V)
        rows = jnp.dot(onehot, tbl,
                       preferred_element_type=jnp.float32,
                       precision=jax.lax.Precision.HIGHEST)      # exact gather on the MXU
        out_ref[:, g * d_model:(g + 1) * d_model] = (
            rows * scale + pe[:, g * d_model:(g + 1) * d_model])


def make_positional_encoding(max_len, d_model):
    # Same construction as PositionalEncoding.__init__ (plain-JAX glue),
    # with the odd-d_model slice fix for the cos columns.
    position = jnp.arange(max_len, dtype=jnp.float32)[:, None]
    div_term = jnp.exp(
        jnp.arange(0, d_model, 2, dtype=jnp.float32) * (-math.log(10000.0) / d_model)
    )
    ang = position * div_term                          # (max_len, ceil(D/2))
    pe = jnp.zeros((max_len, d_model), jnp.float32)
    pe = pe.at[:, 0::2].set(jnp.sin(ang))
    pe = pe.at[:, 1::2].set(jnp.cos(ang[:, : d_model // 2]))
    return pe                                          # (max_len, d_model)


def combined_embedding(tokens, emb_table, pe, *, max_rows_per_tile=1024):
    """tokens: (S, B) int, emb_table: (V, D) f32, pe: (max_len, D) f32 -> (S, B, D) f32."""
    S, B = tokens.shape
    V, D = emb_table.shape
    N = S * B
    scale = float(math.sqrt(D))

    # Lane-packing factor: pack G flat rows into one lane-dense row of width G*D.
    if D < 128 and 128 % D == 0 and N % (128 // D) == 0:
        G = 128 // D
    else:
        G = 1
    N_G = N // G
    W = G * D

    # Row-tile size: whole array if small, otherwise big 8-aligned tiles.
    if N_G <= max_rows_per_tile:
        NT = N_G
    else:
        NT = max_rows_per_tile                        # multiple of 8
    grid = (pl.cdiv(N_G, NT),)

    # Wrapper-side (free, row-major) reshapes into the packed lane-dense layout.
    ids_packed = tokens.astype(jnp.int32).reshape(N_G, G)
    pe_packed = jnp.broadcast_to(pe[:S, None, :], (S, B, D)).reshape(N_G, W)

    kernel = functools.partial(
        _combined_embedding_kernel, scale=scale, vocab=V, d_model=D, group=G)

    out2d = pl.pallas_call(
        kernel,
        grid=grid,
        in_specs=[
            pl.BlockSpec((NT, G), lambda i: (i, 0)),   # packed token ids
            pl.BlockSpec((V, D), lambda i: (0, 0)),    # whole table resident in VMEM
            pl.BlockSpec((NT, W), lambda i: (i, 0)),   # packed PE tile
        ],
        out_specs=pl.BlockSpec((NT, W), lambda i: (i, 0)),
        out_shape=jax.ShapeDtypeStruct((N_G, W), jnp.float32),
        compiler_params=pltpu.CompilerParams(dimension_semantics=("parallel",)),
    )(ids_packed, emb_table, pe_packed)

    return out2d.reshape(N, D).reshape(S, B, D)


if __name__ == "__main__":
    d_model = 32
    vocab = 64
    S, B = 8, 2
    max_len = 5000

    key = jax.random.PRNGKey(0)
    k_emb, k_tok = jax.random.split(key)
    # nn.Embedding default init: N(0, 1)
    emb_table = jax.random.normal(k_emb, (vocab, d_model), jnp.float32)
    tokens = jax.random.randint(k_tok, (S, B), 0, vocab, dtype=jnp.int32)
    pe = make_positional_encoding(max_len, d_model)

    out = combined_embedding(tokens, emb_table, pe)
    out = jax.block_until_ready(out)

    # Pure-JAX reference of the PyTorch forward (eval mode).
    ref = emb_table[tokens] * math.sqrt(d_model) + pe[:S, None, :]
    assert out.shape == (S, B, d_model)
    assert jnp.allclose(out, ref, atol=1e-4, rtol=1e-5), "kernel output mismatch vs reference"

    print("KERNEL_OK")
</pallas_src>

<mosaic_0001>
module attributes {stable_mosaic.version = 11 : i64} {
  func.func @_combined_embedding_kernel(%arg0: i32, %arg1: memref<4x4xi32, #tpu.memory_space<vmem>>, %arg2: memref<64x32xf32, #tpu.memory_space<vmem>>, %arg3: memref<4x128xf32, #tpu.memory_space<vmem>>, %arg4: memref<4x128xf32, #tpu.memory_space<vmem>>) attributes {dimension_semantics = [#tpu.dimension_semantics<parallel>], iteration_bounds = array<i64: 1>, scalar_prefetch = 0 : i64, scratch_operands = 0 : i64, tpu.core_type = #tpu.core_type<tc>, window_params = [{transform_indices = @transform_0, window_bounds = array<i64: 4, 4>}, {pipeline_mode = #tpu.pipeline_mode<synchronous>, transform_indices = @transform_1, window_bounds = array<i64: 64, 32>}, {transform_indices = @transform_2, window_bounds = array<i64: 4, 128>}, {transform_indices = @transform_3, window_bounds = array<i64: 4, 128>}]} {
    %c0 = arith.constant 0 : index
    %c0_0 = arith.constant 0 : index
    %0 = vector.load %arg2[%c0, %c0_0] : memref<64x32xf32, #tpu.memory_space<vmem>>, vector<64x32xf32>
    %c0_1 = arith.constant 0 : index
    %c0_2 = arith.constant 0 : index
    %1 = vector.load %arg3[%c0_1, %c0_2] : memref<4x128xf32, #tpu.memory_space<vmem>>, vector<4x128xf32>
    %c0_3 = arith.constant 0 : index
    %c0_4 = arith.constant 0 : index
    %2 = vector.load %arg1[%c0_3, %c0_4] : memref<4x4xi32, #tpu.memory_space<vmem>>, vector<4x4xi32>
    %c0_i32 = arith.constant 0 : i32
    %c63_i32 = arith.constant 63 : i32
    %3 = vector.broadcast %c0_i32 : i32 to vector<4x4xi32>
    %4 = arith.maxsi %3, %2 : vector<4x4xi32>
    %5 = vector.broadcast %c63_i32 : i32 to vector<4x4xi32>
    %6 = arith.minsi %5, %4 : vector<4x4xi32>
    %7 = vector.extract_strided_slice %6 {offsets = [0, 0], sizes = [4, 1], strides = [1, 1]} : vector<4x4xi32> to vector<4x1xi32>
    %8 = tpu.iota {dimensions = array<i32: 1>} : vector<4x64xi32>
    %9 = vector.broadcast %7 : vector<4x1xi32> to vector<4x64xi32>
    %10 = arith.cmpi eq, %9, %8 : vector<4x64xi32>
    %11 = arith.extui %10 : vector<4x64xi1> to vector<4x64xi32>
    %12 = arith.sitofp %11 : vector<4x64xi32> to vector<4x64xf32>
    %cst = arith.constant dense<0.000000e+00> : vector<4x32xf32>
    %13 = tpu.matmul %12, %0, %cst {dimension_numbers = #tpu.dot_dimension_numbers<[1], [0], [0], [1], [0, 0, 1, 1], [], []>, precision = #tpu.contract_precision<fp32>} : vector<4x64xf32>, vector<64x32xf32>, vector<4x32xf32> -> vector<4x32xf32>
    %cst_5 = arith.constant 5.65685415 : f32
    %14 = vector.broadcast %cst_5 : f32 to vector<4x32xf32>
    %15 = arith.mulf %13, %14 : vector<4x32xf32>
    %16 = vector.extract_strided_slice %1 {offsets = [0, 0], sizes = [4, 32], strides = [1, 1]} : vector<4x128xf32> to vector<4x32xf32>
    %17 = arith.addf %15, %16 : vector<4x32xf32>
    %c0_6 = arith.constant 0 : index
    %c0_7 = arith.constant 0 : index
    %18 = vector.load %arg4[%c0_6, %c0_7] : memref<4x128xf32, #tpu.memory_space<vmem>>, vector<4x32xf32>
    tpu.vector_store %arg4[%c0_6, %c0_7], %17 {strides = array<i32>} : memref<4x128xf32, #tpu.memory_space<vmem>>, vector<4x32xf32>,
    %19 = vector.extract_strided_slice %6 {offsets = [0, 1], sizes = [4, 1], strides = [1, 1]} : vector<4x4xi32> to vector<4x1xi32>
    %20 = tpu.iota {dimensions = array<i32: 1>} : vector<4x64xi32>
    %21 = vector.broadcast %19 : vector<4x1xi32> to vector<4x64xi32>
    %22 = arith.cmpi eq, %21, %20 : vector<4x64xi32>
    %23 = arith.extui %22 : vector<4x64xi1> to vector<4x64xi32>
    %24 = arith.sitofp %23 : vector<4x64xi32> to vector<4x64xf32>
    %cst_8 = arith.constant dense<0.000000e+00> : vector<4x32xf32>
    %25 = tpu.matmul %24, %0, %cst_8 {dimension_numbers = #tpu.dot_dimension_numbers<[1], [0], [0], [1], [0, 0, 1, 1], [], []>, precision = #tpu.contract_precision<fp32>} : vector<4x64xf32>, vector<64x32xf32>, vector<4x32xf32> -> vector<4x32xf32>
    %cst_9 = arith.constant 5.65685415 : f32
    %26 = vector.broadcast %cst_9 : f32 to vector<4x32xf32>
    %27 = arith.mulf %25, %26 : vector<4x32xf32>
    %28 = vector.extract_strided_slice %1 {offsets = [0, 32], sizes = [4, 32], strides = [1, 1]} : vector<4x128xf32> to vector<4x32xf32>
    %29 = arith.addf %27, %28 : vector<4x32xf32>
    %c0_10 = arith.constant 0 : index
    %c32 = arith.constant 32 : index
    %30 = vector.load %arg4[%c0_10, %c32] : memref<4x128xf32, #tpu.memory_space<vmem>>, vector<4x32xf32>
    tpu.vector_store %arg4[%c0_10, %c32], %29 {strides = array<i32>} : memref<4x128xf32, #tpu.memory_space<vmem>>, vector<4x32xf32>,
    %31 = vector.extract_strided_slice %6 {offsets = [0, 2], sizes = [4, 1], strides = [1, 1]} : vector<4x4xi32> to vector<4x1xi32>
    %32 = tpu.iota {dimensions = array<i32: 1>} : vector<4x64xi32>
    %33 = vector.broadcast %31 : vector<4x1xi32> to vector<4x64xi32>
    %34 = arith.cmpi eq, %33, %32 : vector<4x64xi32>
    %35 = arith.extui %34 : vector<4x64xi1> to vector<4x64xi32>
    %36 = arith.sitofp %35 : vector<4x64xi32> to vector<4x64xf32>
    %cst_11 = arith.constant dense<0.000000e+00> : vector<4x32xf32>
    %37 = tpu.matmul %36, %0, %cst_11 {dimension_numbers = #tpu.dot_dimension_numbers<[1], [0], [0], [1], [0, 0, 1, 1], [], []>, precision = #tpu.contract_precision<fp32>} : vector<4x64xf32>, vector<64x32xf32>, vector<4x32xf32> -> vector<4x32xf32>
    %cst_12 = arith.constant 5.65685415 : f32
    %38 = vector.broadcast %cst_12 : f32 to vector<4x32xf32>
    %39 = arith.mulf %37, %38 : vector<4x32xf32>
    %40 = vector.extract_strided_slice %1 {offsets = [0, 64], sizes = [4, 32], strides = [1, 1]} : vector<4x128xf32> to vector<4x32xf32>
    %41 = arith.addf %39, %40 : vector<4x32xf32>
    %c0_13 = arith.constant 0 : index
    %c64 = arith.constant 64 : index
    %42 = vector.load %arg4[%c0_13, %c64] : memref<4x128xf32, #tpu.memory_space<vmem>>, vector<4x32xf32>
    tpu.vector_store %arg4[%c0_13, %c64], %41 {strides = array<i32>} : memref<4x128xf32, #tpu.memory_space<vmem>>, vector<4x32xf32>,
    %43 = vector.extract_strided_slice %6 {offsets = [0, 3], sizes = [4, 1], strides = [1, 1]} : vector<4x4xi32> to vector<4x1xi32>
    %44 = tpu.iota {dimensions = array<i32: 1>} : vector<4x64xi32>
    %45 = vector.broadcast %43 : vector<4x1xi32> to vector<4x64xi32>
    %46 = arith.cmpi eq, %45, %44 : vector<4x64xi32>
    %47 = arith.extui %46 : vector<4x64xi1> to vector<4x64xi32>
    %48 = arith.sitofp %47 : vector<4x64xi32> to vector<4x64xf32>
    %cst_14 = arith.constant dense<0.000000e+00> : vector<4x32xf32>
    %49 = tpu.matmul %48, %0, %cst_14 {dimension_numbers = #tpu.dot_dimension_numbers<[1], [0], [0], [1], [0, 0, 1, 1], [], []>, precision = #tpu.contract_precision<fp32>} : vector<4x64xf32>, vector<64x32xf32>, vector<4x32xf32> -> vector<4x32xf32>
    %cst_15 = arith.constant 5.65685415 : f32
    %50 = vector.broadcast %cst_15 : f32 to vector<4x32xf32>
    %51 = arith.mulf %49, %50 : vector<4x32xf32>
    %52 = vector.extract_strided_slice %1 {offsets = [0, 96], sizes = [4, 32], strides = [1, 1]} : vector<4x128xf32> to vector<4x32xf32>
    %53 = arith.addf %51, %52 : vector<4x32xf32>
    %c0_16 = arith.constant 0 : index
    %c96 = arith.constant 96 : index
    %54 = vector.load %arg4[%c0_16, %c96] : memref<4x128xf32, #tpu.memory_space<vmem>>, vector<4x32xf32>
    tpu.vector_store %arg4[%c0_16, %c96], %53 {strides = array<i32>} : memref<4x128xf32, #tpu.memory_space<vmem>>, vector<4x32xf32>,
    return
  }
  func.func @transform_0(%arg0: i32) -> (i32, i32) {
    %c0_i32 = arith.constant 0 : i32
    %c0_i32_0 = arith.constant 0 : i32
    return %arg0, %c0_i32 : i32, i32
  }
  func.func @transform_1(%arg0: i32) -> (i32, i32) {
    %c0_i32 = arith.constant 0 : i32
    %c0_i32_0 = arith.constant 0 : i32
    %c0_i32_1 = arith.constant 0 : i32
    return %c0_i32, %c0_i32_0 : i32, i32
  }
  func.func @transform_2(%arg0: i32) -> (i32, i32) {
    %c0_i32 = arith.constant 0 : i32
    %c0_i32_0 = arith.constant 0 : i32
    return %arg0, %c0_i32 : i32, i32
  }
  func.func @transform_3(%arg0: i32) -> (i32, i32) {
    %c0_i32 = arith.constant 0 : i32
    %c0_i32_0 = arith.constant 0 : i32
    return %arg0, %c0_i32 : i32, i32
  }
}

</mosaic_0001>

<llo_original>
// kernel: tpu_custom_call.1
$region0: #{tpu_custom_call.1}
  #allocation0 [shape = 'u32[]', space=smem, size = 0x4, offset = 0x4, fixed_abs, tag = 'smem constant byte address 0x4 - core index']
  #allocation1 [shape = 'u32[144,128]{1,0:T(1,128)}', space=vmem, size = 0x12000, scoped, tag = 'internal scratch']
  %s0 = inlined_call_operand.vmem [shape: s32[4,4], index: 0, kind: input, shape index: {}]
  %s1 = inlined_call_operand.vmem [shape: f32[64,32], index: 1, kind: input, shape index: {}]
  %s2 = inlined_call_operand.vmem [shape: f32[4,128], index: 2, kind: input, shape index: {}]
  %s3 = inlined_call_operand.hbm [shape: f32[4,128], index: 3, kind: output, shape index: {}]
  %s4 = sld [smem:[#allocation0]]
  $region22: #{tpu_custom_call.1} parent=0
    _
  %s6 = ssub.s32 1, %s4
  %s7 = scalar_select 0, %s6, %s4
  $region1: #{tpu_custom_call.1} parent=0
    #allocation2 [shape = 'u8[2048]{0}', space=vmem, size = 0x800, scoped, tag = 'output window, operand 0, single buffered']
    #allocation3 [shape = 's32[1]{0}', space=sflag, size = 0x4, scoped, tag = 'scoped memory for tpu_custom_call.1']
    %8 = vsyncpa [#allocation3], 0
    // Predicated region
    $region2: #{tpu_custom_call.1} parent=1 // pred_check
      _
    $region3: #{tpu_custom_call.1} parent=1 // pred_check_branch
      %10 = sbr.rel (0) target = $region5
    $region4: #{tpu_custom_call.1} parent=1 // pred_region
      _
    $region5: #{tpu_custom_call.1} parent=1 // pred_fallthru
      _
    // Predicated region
    $region6: #{tpu_custom_call.1} parent=1 // pred_check
      _
    $region7: #{tpu_custom_call.1} parent=1 // pred_check_branch
      %12 = sbr.rel (0) target = $region9
    $region8: #{tpu_custom_call.1} parent=1 // pred_region
      _
    $region9: #{tpu_custom_call.1} parent=1 // pred_fallthru
      _
    // Predicated region
    $region10: #{tpu_custom_call.1} parent=1 // pred_check
      _
    $region11: #{tpu_custom_call.1} parent=1 // pred_check_branch
      %14 = sbr.rel (0) target = $region13
    $region12: #{tpu_custom_call.1} parent=1 // pred_region
      _
    $region13: #{tpu_custom_call.1} parent=1 // pred_fallthru
      _
    %v15 = vld [vmem:[%s1] sm:$0xff]
    %v16 = vld [vmem:[%s1 + $0x8] sm:$0xff]
    %v17 = vld [vmem:[%s1 + $0x10] sm:$0xff]
    %v18 = vld [vmem:[%s1 + $0x18] sm:$0xff]
    %v19 = vld [vmem:[%s1 + $0x20] sm:$0xff]
    %v20 = vld [vmem:[%s1 + $0x28] sm:$0xff]
    %v21 = vld [vmem:[%s1 + $0x30] sm:$0xff]
    %v22 = vld [vmem:[%s1 + $0x38] sm:$0xff]
    %v23 = vld [vmem:[%s2] sm:$0xf]
    %v24 = vld [vmem:[%s0] sm:$0xf]
    %vm25 = vcmp.gt.s32.totalorder %v24, 0
    %v26 = vsel %vm25, %v24, 0
    %vm27 = vcmp.lt.s32.totalorder %v26, 63
    %v28 = vsel %vm27, %v26, 63
    %v29 = vlaneseq
    %v30 = vand.u32 %v29, 127
    %31 = vset.pattern.permute.xlu0 0
    %32 = vperm.xlu0 %31, %v28
    %v33 = vpop.permute.xlu0 %32
    %vm34 = vcmp.eq.s32.totalorder %v33, %v30
    %v35 = vsel %vm34, 1, 0
    %v36 = vcvt.s32.f32 %v35
    %vm37 = vcmask 523264
    %v39 = vsel %vm37, %v36, 0
    %41 = vmatprep.subr.mxu0 0.0
    %42 = vmatpush1.msra.mxu0 0.0
    %43 = vmatprep.subr.mxu0 0.0
    %44 = vmatpush1.msra.mxu0 0.0
    %45 = vmatprep.subr.mxu0 0.0
    %46 = vmatpush1.msra.mxu0 0.0
    %47 = vmatprep.subr.mxu0 0.0
    %48 = vmatpush1.msra.mxu0 0.0
    %49 = vmatprep.subr.mxu0 0.0
    %50 = vmatpush1.msra.mxu0 0.0
    %51 = vmatprep.subr.mxu0 0.0
    %52 = vmatpush1.msra.mxu0 0.0
    %53 = vmatprep.subr.mxu0 0.0
    %54 = vmatpush1.msra.mxu0 0.0
    %55 = vmatprep.subr.mxu0 0.0
    %56 = vmatpush1.msra.mxu0 0.0
    %57 = vmatprep.subr.mxu0 0.0
    %v58 = vand.u32 %v22, 4294901760
    %59 = vmatpush1.msra.mxu0 %v58
    %60 = vmatprep.subr.mxu0 0.0
    %v61 = vand.u32 %v21, 4294901760
    %62 = vmatpush1.msra.mxu0 %v61
    %63 = vmatprep.subr.mxu0 0.0
    %v64 = vand.u32 %v20, 4294901760
    %65 = vmatpush1.msra.mxu0 %v64
    %66 = vmatprep.subr.mxu0 0.0
    %v67 = vand.u32 %v19, 4294901760
    %68 = vmatpush1.msra.mxu0 %v67
    %69 = vmatprep.subr.mxu0 0.0
    %v70 = vand.u32 %v18, 4294901760
    %71 = vmatpush1.msra.mxu0 %v70
    %72 = vmatprep.subr.mxu0 0.0
    %v73 = vand.u32 %v17, 4294901760
    %74 = vmatpush1.msra.mxu0 %v73
    %75 = vmatprep.subr.mxu0 0.0
    %v76 = vand.u32 %v16, 4294901760
    %77 = vmatpush1.msra.mxu0 %v76
    %78 = vmatprep.subr.mxu0 0.0
    %v79 = vand.u32 %v15, 4294901760
    %80 = vmatpush1.msra.mxu0 %v79
    %81 = vmatprep.subr.mxu0 0.0
    %82 = vmatpush2.msra.mxu0 0.0
    %83 = vmatprep.subr.mxu0 0.0
    %84 = vmatpush2.msra.mxu0 0.0
    %85 = vmatprep.subr.mxu0 0.0
    %86 = vmatpush2.msra.mxu0 0.0
    %87 = vmatprep.subr.mxu0 0.0
    %88 = vmatpush2.msra.mxu0 0.0
    %89 = vmatprep.subr.mxu0 0.0
    %90 = vmatpush2.msra.mxu0 0.0
    %91 = vmatprep.subr.mxu0 0.0
    %92 = vmatpush2.msra.mxu0 0.0
    %93 = vmatprep.subr.mxu0 0.0
    %94 = vmatpush2.msra.mxu0 0.0
    %95 = vmatprep.subr.mxu0 0.0
    %96 = vmatpush2.msra.mxu0 0.0
    %97 = vmatprep.subr.mxu0 0.0
    %98 = vmatpush2.msra.mxu0 0.0
    %99 = vmatprep.subr.mxu0 0.0
    %100 = vmatpush2.msra.mxu0 0.0
    %101 = vmatprep.subr.mxu0 0.0
    %102 = vmatpush2.msra.mxu0 0.0
    %103 = vmatprep.subr.mxu0 0.0
    %104 = vmatpush2.msra.mxu0 0.0
    %105 = vmatprep.subr.mxu0 0.0
    %106 = vmatpush2.msra.mxu0 0.0
    %107 = vmatprep.subr.mxu0 0.0
    %108 = vmatpush2.msra.mxu0 0.0
    %109 = vmatprep.subr.mxu0 0.0
    %110 = vmatpush2.msra.mxu0 0.0
    %111 = vmatprep.subr.mxu0 0.0
    %112 = vmatpush2.msra.mxu0 0.0
    %113 = vmatprep.mubr.f32.mxu0 0.0
    %v114 = vand.u32 %v39, 4294901760
    %v115 = vsub.f32 %v39, %v114
    %v116 = vand.u32 %v115, 4294901760
    %v117 = vsub.f32 %v115, %v116
    %v118 = vand.u32 %v117, 4294901760
    %119 = vmatmul.mubr.f32.gmra.mxu0 %v118
    %v120 = vpop.f32.mrf.mxu0
    %v121 = vadd.f32 0.0, %v120
    %v122 = vpop.f32.mrf.mxu0
    %123 = vdwg.mxu0
    %124 = vmatprep.subr.mxu0 0.0
    %125 = vmatpush1.msra.mxu0 0.0
    %126 = vmatprep.subr.mxu0 0.0
    %127 = vmatpush1.msra.mxu0 0.0
    %128 = vmatprep.subr.mxu0 0.0
    %129 = vmatpush1.msra.mxu0 0.0
    %130 = vmatprep.subr.mxu0 0.0
    %131 = vmatpush1.msra.mxu0 0.0
    %132 = vmatprep.subr.mxu0 0.0
    %133 = vmatpush1.msra.mxu0 0.0
    %134 = vmatprep.subr.mxu0 0.0
    %135 = vmatpush1.msra.mxu0 0.0
    %136 = vmatprep.subr.mxu0 0.0
    %137 = vmatpush1.msra.mxu0 0.0
    %138 = vmatprep.subr.mxu0 0.0
    %139 = vmatpush1.msra.mxu0 0.0
    %140 = vmatprep.subr.mxu0 0.0
    %v141 = vand.u32 %v22, 4294901760
    %v142 = vsub.f32 %v22, %v141
    %v143 = vand.u32 %v142, 4294901760
    %v144 = vsub.f32 %v142, %v143
    %v145 = vand.u32 %v144, 4294901760
    %146 = vmatpush1.msra.mxu0 %v145
    %147 = vmatprep.subr.mxu0 0.0
    %v148 = vand.u32 %v21, 4294901760
    %v149 = vsub.f32 %v21, %v148
    %v150 = vand.u32 %v149, 4294901760
    %v151 = vsub.f32 %v149, %v150
    %v152 = vand.u32 %v151, 4294901760
    %153 = vmatpush1.msra.mxu0 %v152
    %154 = vmatprep.subr.mxu0 0.0
    %v155 = vand.u32 %v20, 4294901760
    %v156 = vsub.f32 %v20, %v155
    %v157 = vand.u32 %v156, 4294901760
    %v158 = vsub.f32 %v156, %v157
    %v159 = vand.u32 %v158, 4294901760
    %160 = vmatpush1.msra.mxu0 %v159
    %161 = vmatprep.subr.mxu0 0.0
    %v162 = vand.u32 %v19, 4294901760
    %v163 = vsub.f32 %v19, %v162
    %v164 = vand.u32 %v163, 4294901760
    %v165 = vsub.f32 %v163, %v164
    %v166 = vand.u32 %v165, 4294901760
    %167 = vmatpush1.msra.mxu0 %v166
    %168 = vmatprep.subr.mxu0 0.0
    %v169 = vand.u32 %v18, 4294901760
    %v170 = vsub.f32 %v18, %v169
    %v171 = vand.u32 %v170, 4294901760
    %v172 = vsub.f32 %v170, %v171
    %v173 = vand.u32 %v172, 4294901760
    %174 = vmatpush1.msra.mxu0 %v173
    %175 = vmatprep.subr.mxu0 0.0
    %v176 = vand.u32 %v17, 4294901760
    %v177 = vsub.f32 %v17, %v176
    %v178 = vand.u32 %v177, 4294901760
    %v179 = vsub.f32 %v177, %v178
    %v180 = vand.u32 %v179, 4294901760
    %181 = vmatpush1.msra.mxu0 %v180
    %182 = vmatprep.subr.mxu0 0.0
    %v183 = vand.u32 %v16, 4294901760
    %v184 = vsub.f32 %v16, %v183
    %v185 = vand.u32 %v184, 4294901760
    %v186 = vsub.f32 %v184, %v185
    %v187 = vand.u32 %v186, 4294901760
    %188 = vmatpush1.msra.mxu0 %v187
    %189 = vmatprep.subr.mxu0 0.0
    %v190 = vand.u32 %v15, 4294901760
    %v191 = vsub.f32 %v15, %v190
    %v192 = vand.u32 %v191, 4294901760
    %v193 = vsub.f32 %v191, %v192
    %v194 = vand.u32 %v193, 4294901760
    %195 = vmatpush1.msra.mxu0 %v194
    %196 = vmatprep.subr.mxu0 0.0
    %197 = vmatpush2.msra.mxu0 0.0
    %198 = vmatprep.subr.mxu0 0.0
    %199 = vmatpush2.msra.mxu0 0.0
    %200 = vmatprep.subr.mxu0 0.0
    %201 = vmatpush2.msra.mxu0 0.0
    %202 = vmatprep.subr.mxu0 0.0
    %203 = vmatpush2.msra.mxu0 0.0
    %204 = vmatprep.subr.mxu0 0.0
    %205 = vmatpush2.msra.mxu0 0.0
    %206 = vmatprep.subr.mxu0 0.0
    %207 = vmatpush2.msra.mxu0 0.0
    %208 = vmatprep.subr.mxu0 0.0
    %209 = vmatpush2.msra.mxu0 0.0
    %210 = vmatprep.subr.mxu0 0.0
    %211 = vmatpush2.msra.mxu0 0.0
    %212 = vmatprep.subr.mxu0 0.0
    %213 = vmatpush2.msra.mxu0 0.0
    %214 = vmatprep.subr.mxu0 0.0
    %215 = vmatpush2.msra.mxu0 0.0
    %216 = vmatprep.subr.mxu0 0.0
    %217 = vmatpush2.msra.mxu0 0.0
    %218 = vmatprep.subr.mxu0 0.0
    %219 = vmatpush2.msra.mxu0 0.0
    %220 = vmatprep.subr.mxu0 0.0
    %221 = vmatpush2.msra.mxu0 0.0
    %222 = vmatprep.subr.mxu0 0.0
    %223 = vmatpush2.msra.mxu0 0.0
    %224 = vmatprep.subr.mxu0 0.0
    %225 = vmatpush2.msra.mxu0 0.0
    %226 = vmatprep.subr.mxu0 0.0
    %227 = vmatpush2.msra.mxu0 0.0
    %228 = vmatprep.mubr.f32.mxu0 0.0
    %v229 = vand.u32 %v39, 4294901760
    %230 = vmatmul.mubr.f32.gmra.mxu0 %v229
    %v231 = vpop.f32.mrf.mxu0
    %v232 = vadd.f32 %v121, %v231
    %v233 = vpop.f32.mrf.mxu0
    %234 = vdwg.mxu0
    %235 = vmatprep.subr.mxu0 0.0
    %236 = vmatpush1.msra.mxu0 0.0
    %237 = vmatprep.subr.mxu0 0.0
    %238 = vmatpush1.msra.mxu0 0.0
    %239 = vmatprep.subr.mxu0 0.0
    %240 = vmatpush1.msra.mxu0 0.0
    %241 = vmatprep.subr.mxu0 0.0
    %242 = vmatpush1.msra.mxu0 0.0
    %243 = vmatprep.subr.mxu0 0.0
    %244 = vmatpush1.msra.mxu0 0.0
    %245 = vmatprep.subr.mxu0 0.0
    %246 = vmatpush1.msra.mxu0 0.0
    %247 = vmatprep.subr.mxu0 0.0
    %248 = vmatpush1.msra.mxu0 0.0
    %249 = vmatprep.subr.mxu0 0.0
    %250 = vmatpush1.msra.mxu0 0.0
    %251 = vmatprep.subr.mxu0 0.0
    %v252 = vand.u32 %v22, 4294901760
    %v253 = vsub.f32 %v22, %v252
    %254 = vmatpush1.msra.mxu0 %v253
    %255 = vmatprep.subr.mxu0 0.0
    %v256 = vand.u32 %v21, 4294901760
    %v257 = vsub.f32 %v21, %v256
    %258 = vmatpush1.msra.mxu0 %v257
    %259 = vmatprep.subr.mxu0 0.0
    %v260 = vand.u32 %v20, 4294901760
    %v261 = vsub.f32 %v20, %v260
    %262 = vmatpush1.msra.mxu0 %v261
    %263 = vmatprep.subr.mxu0 0.0
    %v264 = vand.u32 %v19, 4294901760
    %v265 = vsub.f32 %v19, %v264
    %266 = vmatpush1.msra.mxu0 %v265
    %267 = vmatprep.subr.mxu0 0.0
    %v268 = vand.u32 %v18, 4294901760
    %v269 = vsub.f32 %v18, %v268
    %270 = vmatpush1.msra.mxu0 %v269
    %271 = vmatprep.subr.mxu0 0.0
    %v272 = vand.u32 %v17, 4294901760
    %v273 = vsub.f32 %v17, %v272
    %274 = vmatpush1.msra.mxu0 %v273
    %275 = vmatprep.subr.mxu0 0.0
    %v276 = vand.u32 %v16, 4294901760
    %v277 = vsub.f32 %v16, %v276
    %278 = vmatpush1.msra.mxu0 %v277
    %279 = vmatprep.subr.mxu0 0.0
    %v280 = vand.u32 %v15, 4294901760
    %v281 = vsub.f32 %v15, %v280
    %282 = vmatpush1.msra.mxu0 %v281
    %283 = vmatprep.subr.mxu0 0.0
    %284 = vmatpush2.msra.mxu0 0.0
    %285 = vmatprep.subr.mxu0 0.0
    %286 = vmatpush2.msra.mxu0 0.0
    %287 = vmatprep.subr.mxu0 0.0
    %288 = vmatpush2.msra.mxu0 0.0
    %289 = vmatprep.subr.mxu0 0.0
    %290 = vmatpush2.msra.mxu0 0.0
    %291 = vmatprep.subr.mxu0 0.0
    %292 = vmatpush2.msra.mxu0 0.0
    %293 = vmatprep.subr.mxu0 0.0
    %294 = vmatpush2.msra.mxu0 0.0
    %295 = vmatprep.subr.mxu0 0.0
    %296 = vmatpush2.msra.mxu0 0.0
    %297 = vmatprep.subr.mxu0 0.0
    %298 = vmatpush2.msra.mxu0 0.0
    %299 = vmatprep.subr.mxu0 0.0
    %300 = vmatpush2.msra.mxu0 0.0
    %301 = vmatprep.subr.mxu0 0.0
    %302 = vmatpush2.msra.mxu0 0.0
    %303 = vmatprep.subr.mxu0 0.0
    %304 = vmatpush2.msra.mxu0 0.0
    %305 = vmatprep.subr.mxu0 0.0
    %306 = vmatpush2.msra.mxu0 0.0
    %307 = vmatprep.subr.mxu0 0.0
    %308 = vmatpush2.msra.mxu0 0.0
    %309 = vmatprep.subr.mxu0 0.0
    %310 = vmatpush2.msra.mxu0 0.0
    %311 = vmatprep.subr.mxu0 0.0
    %312 = vmatpush2.msra.mxu0 0.0
    %313 = vmatprep.subr.mxu0 0.0
    %314 = vmatpush2.msra.mxu0 0.0
    %315 = vmatprep.mubr.f32.mxu0 0.0
    %v316 = vand.u32 %v39, 4294901760
    %v317 = vsub.f32 %v39, %v316
    %318 = vmatmul.mubr.f32.gmra.mxu0 %v317
    %v319 = vpop.f32.mrf.mxu0
    %v320 = vadd.f32 %v232, %v319
    %v321 = vpop.f32.mrf.mxu0
    %322 = vdwg.mxu0
    %323 = vmatprep.subr.mxu0 0.0
    %324 = vmatpush1.msra.mxu0 0.0
    %325 = vmatprep.subr.mxu0 0.0
    %326 = vmatpush1.msra.mxu0 0.0
    %327 = vmatprep.subr.mxu0 0.0
    %328 = vmatpush1.msra.mxu0 0.0
    %329 = vmatprep.subr.mxu0 0.0
    %330 = vmatpush1.msra.mxu0 0.0
    %331 = vmatprep.subr.mxu0 0.0
    %332 = vmatpush1.msra.mxu0 0.0
    %333 = vmatprep.subr.mxu0 0.0
    %334 = vmatpush1.msra.mxu0 0.0
    %335 = vmatprep.subr.mxu0 0.0
    %336 = vmatpush1.msra.mxu0 0.0
    %337 = vmatprep.subr.mxu0 0.0
    %338 = vmatpush1.msra.mxu0 0.0
    %339 = vmatprep.subr.mxu0 0.0
    %v340 = vand.u32 %v22, 4294901760
    %341 = vmatpush1.msra.mxu0 %v340
    %342 = vmatprep.subr.mxu0 0.0
    %v343 = vand.u32 %v21, 4294901760
    %344 = vmatpush1.msra.mxu0 %v343
    %345 = vmatprep.subr.mxu0 0.0
    %v346 = vand.u32 %v20, 4294901760
    %347 = vmatpush1.msra.mxu0 %v346
    %348 = vmatprep.subr.mxu0 0.0
    %v349 = vand.u32 %v19, 4294901760
    %350 = vmatpush1.msra.mxu0 %v349
    %351 = vmatprep.subr.mxu0 0.0
    %v352 = vand.u32 %v18, 4294901760
    %353 = vmatpush1.msra.mxu0 %v352
    %354 = vmatprep.subr.mxu0 0.0
    %v355 = vand.u32 %v17, 4294901760
    %356 = vmatpush1.msra.mxu0 %v355
    %357 = vmatprep.subr.mxu0 0.0
    %v358 = vand.u32 %v16, 4294901760
    %359 = vmatpush1.msra.mxu0 %v358
    %360 = vmatprep.subr.mxu0 0.0
    %v361 = vand.u32 %v15, 4294901760
    %362 = vmatpush1.msra.mxu0 %v361
    %363 = vmatprep.subr.mxu0 0.0
    %364 = vmatpush2.msra.mxu0 0.0
    %365 = vmatprep.subr.mxu0 0.0
    %366 = vmatpush2.msra.mxu0 0.0
    %367 = vmatprep.subr.mxu0 0.0
    %368 = vmatpush2.msra.mxu0 0.0
    %369 = vmatprep.subr.mxu0 0.0
    %370 = vmatpush2.msra.mxu0 0.0
    %371 = vmatprep.subr.mxu0 0.0
    %372 = vmatpush2.msra.mxu0 0.0
    %373 = vmatprep.subr.mxu0 0.0
    %374 = vmatpush2.msra.mxu0 0.0
    %375 = vmatprep.subr.mxu0 0.0
    %376 = vmatpush2.msra.mxu0 0.0
    %377 = vmatprep.subr.mxu0 0.0
    %378 = vmatpush2.msra.mxu0 0.0
    %379 = vmatprep.subr.mxu0 0.0
    %380 = vmatpush2.msra.mxu0 0.0
    %381 = vmatprep.subr.mxu0 0.0
    %382 = vmatpush2.msra.mxu0 0.0
    %383 = vmatprep.subr.mxu0 0.0
    %384 = vmatpush2.msra.mxu0 0.0
    %385 = vmatprep.subr.mxu0 0.0
    %386 = vmatpush2.msra.mxu0 0.0
    %387 = vmatprep.subr.mxu0 0.0
    %388 = vmatpush2.msra.mxu0 0.0
    %389 = vmatprep.subr.mxu0 0.0
    %390 = vmatpush2.msra.mxu0 0.0
    %391 = vmatprep.subr.mxu0 0.0
    %392 = vmatpush2.msra.mxu0 0.0
    %393 = vmatprep.subr.mxu0 0.0
    %394 = vmatpush2.msra.mxu0 0.0
    %395 = vmatprep.mubr.f32.mxu0 0.0
    %v396 = vand.u32 %v39, 4294901760
    %v397 = vsub.f32 %v39, %v396
    %v398 = vand.u32 %v397, 4294901760
    %399 = vmatmul.mubr.f32.gmra.mxu0 %v398
    %v400 = vpop.f32.mrf.mxu0
    %v401 = vadd.f32 %v320, %v400
    %v402 = vpop.f32.mrf.mxu0
    %403 = vdwg.mxu0
    %404 = vmatprep.subr.mxu0 0.0
    %405 = vmatpush1.msra.mxu0 0.0
    %406 = vmatprep.subr.mxu0 0.0
    %407 = vmatpush1.msra.mxu0 0.0
    %408 = vmatprep.subr.mxu0 0.0
    %409 = vmatpush1.msra.mxu0 0.0
    %410 = vmatprep.subr.mxu0 0.0
    %411 = vmatpush1.msra.mxu0 0.0
    %412 = vmatprep.subr.mxu0 0.0
    %413 = vmatpush1.msra.mxu0 0.0
    %414 = vmatprep.subr.mxu0 0.0
    %415 = vmatpush1.msra.mxu0 0.0
    %416 = vmatprep.subr.mxu0 0.0
    %417 = vmatpush1.msra.mxu0 0.0
    %418 = vmatprep.subr.mxu0 0.0
    %419 = vmatpush1.msra.mxu0 0.0
    %420 = vmatprep.subr.mxu0 0.0
    %v421 = vand.u32 %v22, 4294901760
    %v422 = vsub.f32 %v22, %v421
    %v423 = vand.u32 %v422, 4294901760
    %424 = vmatpush1.msra.mxu0 %v423
    %425 = vmatprep.subr.mxu0 0.0
    %v426 = vand.u32 %v21, 4294901760
    %v427 = vsub.f32 %v21, %v426
    %v428 = vand.u32 %v427, 4294901760
    %429 = vmatpush1.msra.mxu0 %v428
    %430 = vmatprep.subr.mxu0 0.0
    %v431 = vand.u32 %v20, 4294901760
    %v432 = vsub.f32 %v20, %v431
    %v433 = vand.u32 %v432, 4294901760
    %434 = vmatpush1.msra.mxu0 %v433
    %435 = vmatprep.subr.mxu0 0.0
    %v436 = vand.u32 %v19, 4294901760
    %v437 = vsub.f32 %v19, %v436
    %v438 = vand.u32 %v437, 4294901760
    %439 = vmatpush1.msra.mxu0 %v438
    %440 = vmatprep.subr.mxu0 0.0
    %v441 = vand.u32 %v18, 4294901760
    %v442 = vsub.f32 %v18, %v441
    %v443 = vand.u32 %v442, 4294901760
    %444 = vmatpush1.msra.mxu0 %v443
    %445 = vmatprep.subr.mxu0 0.0
    %v446 = vand.u32 %v17, 4294901760
    %v447 = vsub.f32 %v17, %v446
    %v448 = vand.u32 %v447, 4294901760
    %449 = vmatpush1.msra.mxu0 %v448
    %450 = vmatprep.subr.mxu0 0.0
    %v451 = vand.u32 %v16, 4294901760
    %v452 = vsub.f32 %v16, %v451
    %v453 = vand.u32 %v452, 4294901760
    %454 = vmatpush1.msra.mxu0 %v453
    %455 = vmatprep.subr.mxu0 0.0
    %v456 = vand.u32 %v15, 4294901760
    %v457 = vsub.f32 %v15, %v456
    %v458 = vand.u32 %v457, 4294901760
    %459 = vmatpush1.msra.mxu0 %v458
    %460 = vmatprep.subr.mxu0 0.0
    %461 = vmatpush2.msra.mxu0 0.0
    %462 = vmatprep.subr.mxu0 0.0
    %463 = vmatpush2.msra.mxu0 0.0
    %464 = vmatprep.subr.mxu0 0.0
    %465 = vmatpush2.msra.mxu0 0.0
    %466 = vmatprep.subr.mxu0 0.0
    %467 = vmatpush2.msra.mxu0 0.0
    %468 = vmatprep.subr.mxu0 0.0
    %469 = vmatpush2.msra.mxu0 0.0
    %470 = vmatprep.subr.mxu0 0.0
    %471 = vmatpush2.msra.mxu0 0.0
    %472 = vmatprep.subr.mxu0 0.0
    %473 = vmatpush2.msra.mxu0 0.0
    %474 = vmatprep.subr.mxu0 0.0
    %475 = vmatpush2.msra.mxu0 0.0
    %476 = vmatprep.subr.mxu0 0.0
    %477 = vmatpush2.msra.mxu0 0.0
    %478 = vmatprep.subr.mxu0 0.0
    %479 = vmatpush2.msra.mxu0 0.0
    %480 = vmatprep.subr.mxu0 0.0
    %481 = vmatpush2.msra.mxu0 0.0
    %482 = vmatprep.subr.mxu0 0.0
    %483 = vmatpush2.msra.mxu0 0.0
    %484 = vmatprep.subr.mxu0 0.0
    %485 = vmatpush2.msra.mxu0 0.0
    %486 = vmatprep.subr.mxu0 0.0
    %487 = vmatpush2.msra.mxu0 0.0
    %488 = vmatprep.subr.mxu0 0.0
    %489 = vmatpush2.msra.mxu0 0.0
    %490 = vmatprep.subr.mxu0 0.0
    %491 = vmatpush2.msra.mxu0 0.0
    %492 = vmatprep.mubr.f32.mxu0 0.0
    %v493 = vand.u32 %v39, 4294901760
    %494 = vmatmul.mubr.f32.gmra.mxu0 %v493
    %v495 = vpop.f32.mrf.mxu0
    %v496 = vadd.f32 %v401, %v495
    %v497 = vpop.f32.mrf.mxu0
    %498 = vdwg.mxu0
    %499 = vmatprep.subr.mxu0 0.0
    %500 = vmatpush1.msra.mxu0 0.0
    %501 = vmatprep.subr.mxu0 0.0
    %502 = vmatpush1.msra.mxu0 0.0
    %503 = vmatprep.subr.mxu0 0.0
    %504 = vmatpush1.msra.mxu0 0.0
    %505 = vmatprep.subr.mxu0 0.0
    %506 = vmatpush1.msra.mxu0 0.0
    %507 = vmatprep.subr.mxu0 0.0
    %508 = vmatpush1.msra.mxu0 0.0
    %509 = vmatprep.subr.mxu0 0.0
    %510 = vmatpush1.msra.mxu0 0.0
    %511 = vmatprep.subr.mxu0 0.0
    %512 = vmatpush1.msra.mxu0 0.0
    %513 = vmatprep.subr.mxu0 0.0
    %514 = vmatpush1.msra.mxu0 0.0
    %515 = vmatprep.subr.mxu0 0.0
    %v516 = vand.u32 %v22, 4294901760
    %517 = vmatpush1.msra.mxu0 %v516
    %518 = vmatprep.subr.mxu0 0.0
    %v519 = vand.u32 %v21, 4294901760
    %520 = vmatpush1.msra.mxu0 %v519
    %521 = vmatprep.subr.mxu0 0.0
    %v522 = vand.u32 %v20, 4294901760
    %523 = vmatpush1.msra.mxu0 %v522
    %524 = vmatprep.subr.mxu0 0.0
    %v525 = vand.u32 %v19, 4294901760
    %526 = vmatpush1.msra.mxu0 %v525
    %527 = vmatprep.subr.mxu0 0.0
    %v528 = vand.u32 %v18, 4294901760
    %529 = vmatpush1.msra.mxu0 %v528
    %530 = vmatprep.subr.mxu0 0.0
    %v531 = vand.u32 %v17, 4294901760
    %532 = vmatpush1.msra.mxu0 %v531
    %533 = vmatprep.subr.mxu0 0.0
    %v534 = vand.u32 %v16, 4294901760
    %535 = vmatpush1.msra.mxu0 %v534
    %536 = vmatprep.subr.mxu0 0.0
    %v537 = vand.u32 %v15, 4294901760
    %538 = vmatpush1.msra.mxu0 %v537
    %539 = vmatprep.subr.mxu0 0.0
    %540 = vmatpush2.msra.mxu0 0.0
    %541 = vmatprep.subr.mxu0 0.0
    %542 = vmatpush2.msra.mxu0 0.0
    %543 = vmatprep.subr.mxu0 0.0
    %544 = vmatpush2.msra.mxu0 0.0
    %545 = vmatprep.subr.mxu0 0.0
    %546 = vmatpush2.msra.mxu0 0.0
    %547 = vmatprep.subr.mxu0 0.0
    %548 = vmatpush2.msra.mxu0 0.0
    %549 = vmatprep.subr.mxu0 0.0
    %550 = vmatpush2.msra.mxu0 0.0
    %551 = vmatprep.subr.mxu0 0.0
    %552 = vmatpush2.msra.mxu0 0.0
    %553 = vmatprep.subr.mxu0 0.0
    %554 = vmatpush2.msra.mxu0 0.0
    %555 = vmatprep.subr.mxu0 0.0
    %556 = vmatpush2.msra.mxu0 0.0
    %557 = vmatprep.subr.mxu0 0.0
    %558 = vmatpush2.msra.mxu0 0.0
    %559 = vmatprep.subr.mxu0 0.0
    %560 = vmatpush2.msra.mxu0 0.0
    %561 = vmatprep.subr.mxu0 0.0
    %562 = vmatpush2.msra.mxu0 0.0
    %563 = vmatprep.subr.mxu0 0.0
    %564 = vmatpush2.msra.mxu0 0.0
    %565 = vmatprep.subr.mxu0 0.0
    %566 = vmatpush2.msra.mxu0 0.0
    %567 = vmatprep.subr.mxu0 0.0
    %568 = vmatpush2.msra.mxu0 0.0
    %569 = vmatprep.subr.mxu0 0.0
    %570 = vmatpush2.msra.mxu0 0.0
    %571 = vmatprep.mubr.f32.mxu0 0.0
    %v572 = vand.u32 %v39, 4294901760
    %573 = vmatmul.mubr.f32.gmra.mxu0 %v572
    %v574 = vpop.f32.mrf.mxu0
    %v575 = vadd.f32 %v496, %v574
    %v576 = vpop.f32.mrf.mxu0
    %577 = vdwg.mxu0
    %v578 = vmul.f32 %v575, 5.656854
    %v579 = vadd.f32 %v578, %v23
    %vm580 = vcmask 257024
    %581 = vst.msk [vmem:[#allocation2] sm:$0xf] %vm580, %v579
    %582 = vset.pattern.permute.xlu0 1
    %583 = vperm.xlu0 %582, %v28
    %v584 = vpop.permute.xlu0 %583
    %vm585 = vcmp.eq.s32.totalorder %v584, %v30
    %v586 = vsel %vm585, 1, 0
    %v587 = vcvt.s32.f32 %v586
    %v589 = vsel %vm37, %v587, 0
    %591 = vmatprep.subr.mxu0 0.0
    %592 = vmatpush1.msra.mxu0 0.0
    %593 = vmatprep.subr.mxu0 0.0
    %594 = vmatpush1.msra.mxu0 0.0
    %595 = vmatprep.subr.mxu0 0.0
    %596 = vmatpush1.msra.mxu0 0.0
    %597 = vmatprep.subr.mxu0 0.0
    %598 = vmatpush1.msra.mxu0 0.0
    %599 = vmatprep.subr.mxu0 0.0
    %600 = vmatpush1.msra.mxu0 0.0
    %601 = vmatprep.subr.mxu0 0.0
    %602 = vmatpush1.msra.mxu0 0.0
    %603 = vmatprep.subr.mxu0 0.0
    %604 = vmatpush1.msra.mxu0 0.0
    %605 = vmatprep.subr.mxu0 0.0
    %606 = vmatpush1.msra.mxu0 0.0
    %607 = vmatprep.subr.mxu0 0.0
    %v608 = vand.u32 %v22, 4294901760
    %609 = vmatpush1.msra.mxu0 %v608
    %610 = vmatprep.subr.mxu0 0.0
    %v611 = vand.u32 %v21, 4294901760
    %612 = vmatpush1.msra.mxu0 %v611
    %613 = vmatprep.subr.mxu0 0.0
    %v614 = vand.u32 %v20, 4294901760
    %615 = vmatpush1.msra.mxu0 %v614
    %616 = vmatprep.subr.mxu0 0.0
    %v617 = vand.u32 %v19, 4294901760
    %618 = vmatpush1.msra.mxu0 %v617
    %619 = vmatprep.subr.mxu0 0.0
    %v620 = vand.u32 %v18, 4294901760
    %621 = vmatpush1.msra.mxu0 %v620
    %622 = vmatprep.subr.mxu0 0.0
    %v623 = vand.u32 %v17, 4294901760
    %624 = vmatpush1.msra.mxu0 %v623
    %625 = vmatprep.subr.mxu0 0.0
    %v626 = vand.u32 %v16, 4294901760
    %627 = vmatpush1.msra.mxu0 %v626
    %628 = vmatprep.subr.mxu0 0.0
    %v629 = vand.u32 %v15, 4294901760
    %630 = vmatpush1.msra.mxu0 %v629
    %631 = vmatprep.subr.mxu0 0.0
    %632 = vmatpush2.msra.mxu0 0.0
    %633 = vmatprep.subr.mxu0 0.0
    %634 = vmatpush2.msra.mxu0 0.0
    %635 = vmatprep.subr.mxu0 0.0
    %636 = vmatpush2.msra.mxu0 0.0
    %637 = vmatprep.subr.mxu0 0.0
    %638 = vmatpush2.msra.mxu0 0.0
    %639 = vmatprep.subr.mxu0 0.0
    %640 = vmatpush2.msra.mxu0 0.0
    %641 = vmatprep.subr.mxu0 0.0
    %642 = vmatpush2.msra.mxu0 0.0
    %643 = vmatprep.subr.mxu0 0.0
    %644 = vmatpush2.msra.mxu0 0.0
    %645 = vmatprep.subr.mxu0 0.0
    %646 = vmatpush2.msra.mxu0 0.0
    %647 = vmatprep.subr.mxu0 0.0
    %648 = vmatpush2.msra.mxu0 0.0
    %649 = vmatprep.subr.mxu0 0.0
    %650 = vmatpush2.msra.mxu0 0.0
    %651 = vmatprep.subr.mxu0 0.0
    %652 = vmatpush2.msra.mxu0 0.0
    %653 = vmatprep.subr.mxu0 0.0
    %654 = vmatpush2.msra.mxu0 0.0
    %655 = vmatprep.subr.mxu0 0.0
    %656 = vmatpush2.msra.mxu0 0.0
    %657 = vmatprep.subr.mxu0 0.0
    %658 = vmatpush2.msra.mxu0 0.0
    %659 = vmatprep.subr.mxu0 0.0
    %660 = vmatpush2.msra.mxu0 0.0
    %661 = vmatprep.subr.mxu0 0.0
    %662 = vmatpush2.msra.mxu0 0.0
    %663 = vmatprep.mubr.f32.mxu0 0.0
    %v664 = vand.u32 %v589, 4294901760
    %v665 = vsub.f32 %v589, %v664
    %v666 = vand.u32 %v665, 4294901760
    %v667 = vsub.f32 %v665, %v666
    %v668 = vand.u32 %v667, 4294901760
    %669 = vmatmul.mubr.f32.gmra.mxu0 %v668
    %v670 = vpop.f32.mrf.mxu0
    %v671 = vadd.f32 0.0, %v670
    %v672 = vpop.f32.mrf.mxu0
    %673 = vdwg.mxu0
    %674 = vmatprep.subr.mxu0 0.0
    %675 = vmatpush1.msra.mxu0 0.0
    %676 = vmatprep.subr.mxu0 0.0
    %677 = vmatpush1.msra.mxu0 0.0
    %678 = vmatprep.subr.mxu0 0.0
    %679 = vmatpush1.msra.mxu0 0.0
    %680 = vmatprep.subr.mxu0 0.0
    %681 = vmatpush1.msra.mxu0 0.0
    %682 = vmatprep.subr.mxu0 0.0
    %683 = vmatpush1.msra.mxu0 0.0
    %684 = vmatprep.subr.mxu0 0.0
    %685 = vmatpush1.msra.mxu0 0.0
    %686 = vmatprep.subr.mxu0 0.0
    %687 = vmatpush1.msra.mxu0 0.0
    %688 = vmatprep.subr.mxu0 0.0
    %689 = vmatpush1.msra.mxu0 0.0
    %690 = vmatprep.subr.mxu0 0.0
    %v691 = vand.u32 %v22, 4294901760
    %v692 = vsub.f32 %v22, %v691
    %v693 = vand.u32 %v692, 4294901760
    %v694 = vsub.f32 %v692, %v693
    %v695 = vand.u32 %v694, 4294901760
    %696 = vmatpush1.msra.mxu0 %v695
    %697 = vmatprep.subr.mxu0 0.0
    %v698 = vand.u32 %v21, 4294901760
    %v699 = vsub.f32 %v21, %v698
    %v700 = vand.u32 %v699, 4294901760
    %v701 = vsub.f32 %v699, %v700
    %v702 = vand.u32 %v701, 4294901760
    %703 = vmatpush1.msra.mxu0 %v702
    %704 = vmatprep.subr.mxu0 0.0
    %v705 = vand.u32 %v20, 4294901760
    %v706 = vsub.f32 %v20, %v705
    %v707 = vand.u32 %v706, 4294901760
    %v708 = vsub.f32 %v706, %v707
    %v709 = vand.u32 %v708, 4294901760
    %710 = vmatpush1.msra.mxu0 %v709
    %711 = vmatprep.subr.mxu0 0.0
    %v712 = vand.u32 %v19, 4294901760
    %v713 = vsub.f32 %v19, %v712
    %v714 = vand.u32 %v713, 4294901760
    %v715 = vsub.f32 %v713, %v714
    %v716 = vand.u32 %v715, 4294901760
    %717 = vmatpush1.msra.mxu0 %v716
    %718 = vmatprep.subr.mxu0 0.0
    %v719 = vand.u32 %v18, 4294901760
    %v720 = vsub.f32 %v18, %v719
    %v721 = vand.u32 %v720, 4294901760
    %v722 = vsub.f32 %v720, %v721
    %v723 = vand.u32 %v722, 4294901760
    %724 = vmatpush1.msra.mxu0 %v723
    %725 = vmatprep.subr.mxu0 0.0
    %v726 = vand.u32 %v17, 4294901760
    %v727 = vsub.f32 %v17, %v726
    %v728 = vand.u32 %v727, 4294901760
    %v729 = vsub.f32 %v727, %v728
    %v730 = vand.u32 %v729, 4294901760
    %731 = vmatpush1.msra.mxu0 %v730
    %732 = vmatprep.subr.mxu0 0.0
    %v733 = vand.u32 %v16, 4294901760
    %v734 = vsub.f32 %v16, %v733
    %v735 = vand.u32 %v734, 4294901760
    %v736 = vsub.f32 %v734, %v735
    %v737 = vand.u32 %v736, 4294901760
    %738 = vmatpush1.msra.mxu0 %v737
    %739 = vmatprep.subr.mxu0 0.0
    %v740 = vand.u32 %v15, 4294901760
    %v741 = vsub.f32 %v15, %v740
    %v742 = vand.u32 %v741, 4294901760
    %v743 = vsub.f32 %v741, %v742
    %v744 = vand.u32 %v743, 4294901760
    %745 = vmatpush1.msra.mxu0 %v744
    %746 = vmatprep.subr.mxu0 0.0
    %747 = vmatpush2.msra.mxu0 0.0
    %748 = vmatprep.subr.mxu0 0.0
    %749 = vmatpush2.msra.mxu0 0.0
    %750 = vmatprep.subr.mxu0 0.0
    %751 = vmatpush2.msra.mxu0 0.0
    %752 = vmatprep.subr.mxu0 0.0
    %753 = vmatpush2.msra.mxu0 0.0
    %754 = vmatprep.subr.mxu0 0.0
    %755 = vmatpush2.msra.mxu0 0.0
    %756 = vmatprep.subr.mxu0 0.0
    %757 = vmatpush2.msra.mxu0 0.0
    %758 = vmatprep.subr.mxu0 0.0
    %759 = vmatpush2.msra.mxu0 0.0
    %760 = vmatprep.subr.mxu0 0.0
    %761 = vmatpush2.msra.mxu0 0.0
    %762 = vmatprep.subr.mxu0 0.0
    %763 = vmatpush2.msra.mxu0 0.0
    %764 = vmatprep.subr.mxu0 0.0
    %765 = vmatpush2.msra.mxu0 0.0
    %766 = vmatprep.subr.mxu0 0.0
    %767 = vmatpush2.msra.mxu0 0.0
    %768 = vmatprep.subr.mxu0 0.0
    %769 = vmatpush2.msra.mxu0 0.0
    %770 = vmatprep.subr.mxu0 0.0
    %771 = vmatpush2.msra.mxu0 0.0
    %772 = vmatprep.subr.mxu0 0.0
    %773 = vmatpush2.msra.mxu0 0.0
    %774 = vmatprep.subr.mxu0 0.0
    %775 = vmatpush2.msra.mxu0 0.0
    %776 = vmatprep.subr.mxu0 0.0
    %777 = vmatpush2.msra.mxu0 0.0
    %778 = vmatprep.mubr.f32.mxu0 0.0
    %v779 = vand.u32 %v589, 4294901760
    %780 = vmatmul.mubr.f32.gmra.mxu0 %v779
    %v781 = vpop.f32.mrf.mxu0
    %v782 = vadd.f32 %v671, %v781
    %v783 = vpop.f32.mrf.mxu0
    %784 = vdwg.mxu0
    %785 = vmatprep.subr.mxu0 0.0
    %786 = vmatpush1.msra.mxu0 0.0
    %787 = vmatprep.subr.mxu0 0.0
    %788 = vmatpush1.msra.mxu0 0.0
    %789 = vmatprep.subr.mxu0 0.0
    %790 = vmatpush1.msra.mxu0 0.0
    %791 = vmatprep.subr.mxu0 0.0
    %792 = vmatpush1.msra.mxu0 0.0
    %793 = vmatprep.subr.mxu0 0.0
    %794 = vmatpush1.msra.mxu0 0.0
    %795 = vmatprep.subr.mxu0 0.0
    %796 = vmatpush1.msra.mxu0 0.0
    %797 = vmatprep.subr.mxu0 0.0
    %798 = vmatpush1.msra.mxu0 0.0
    %799 = vmatprep.subr.mxu0 0.0
    %800 = vmatpush1.msra.mxu0 0.0
    %801 = vmatprep.subr.mxu0 0.0
    %v802 = vand.u32 %v22, 4294901760
    %v803 = vsub.f32 %v22, %v802
    %804 = vmatpush1.msra.mxu0 %v803
    %805 = vmatprep.subr.mxu0 0.0
    %v806 = vand.u32 %v21, 4294901760
    %v807 = vsub.f32 %v21, %v806
    %808 = vmatpush1.msra.mxu0 %v807
    %809 = vmatprep.subr.mxu0 0.0
    %v810 = vand.u32 %v20, 4294901760
    %v811 = vsub.f32 %v20, %v810
    %812 = vmatpush1.msra.mxu0 %v811
    %813 = vmatprep.subr.mxu0 0.0
    %v814 = vand.u32 %v19, 4294901760
    %v815 = vsub.f32 %v19, %v814
    %816 = vmatpush1.msra.mxu0 %v815
    %817 = vmatprep.subr.mxu0 0.0
    %v818 = vand.u32 %v18, 4294901760
    %v819 = vsub.f32 %v18, %v818
    %820 = vmatpush1.msra.mxu0 %v819
    %821 = vmatprep.subr.mxu0 0.0
    %v822 = vand.u32 %v17, 4294901760
    %v823 = vsub.f32 %v17, %v822
    %824 = vmatpush1.msra.mxu0 %v823
    %825 = vmatprep.subr.mxu0 0.0
    %v826 = vand.u32 %v16, 4294901760
    %v827 = vsub.f32 %v16, %v826
    %828 = vmatpush1.msra.mxu0 %v827
    %829 = vmatprep.subr.mxu0 0.0
    %v830 = vand.u32 %v15, 4294901760
    %v831 = vsub.f32 %v15, %v830
    %832 = vmatpush1.msra.mxu0 %v831
    %833 = vmatprep.subr.mxu0 0.0
    %834 = vmatpush2.msra.mxu0 0.0
    %835 = vmatprep.subr.mxu0 0.0
    %836 = vmatpush2.msra.mxu0 0.0
    %837 = vmatprep.subr.mxu0 0.0
    %838 = vmatpush2.msra.mxu0 0.0
    %839 = vmatprep.subr.mxu0 0.0
    %840 = vmatpush2.msra.mxu0 0.0
    %841 = vmatprep.subr.mxu0 0.0
    %842 = vmatpush2.msra.mxu0 0.0
    %843 = vmatprep.subr.mxu0 0.0
    %844 = vmatpush2.msra.mxu0 0.0
    %845 = vmatprep.subr.mxu0 0.0
    %846 = vmatpush2.msra.mxu0 0.0
    %847 = vmatprep.subr.mxu0 0.0
    %848 = vmatpush2.msra.mxu0 0.0
    %849 = vmatprep.subr.mxu0 0.0
    %850 = vmatpush2.msra.mxu0 0.0
    %851 = vmatprep.subr.mxu0 0.0
    %852 = vmatpush2.msra.mxu0 0.0
    %853 = vmatprep.subr.mxu0 0.0
    %854 = vmatpush2.msra.mxu0 0.0
    %855 = vmatprep.subr.mxu0 0.0
    %856 = vmatpush2.msra.mxu0 0.0
    %857 = vmatprep.subr.mxu0 0.0
    %858 = vmatpush2.msra.mxu0 0.0
    %859 = vmatprep.subr.mxu0 0.0
    %860 = vmatpush2.msra.mxu0 0.0
    %861 = vmatprep.subr.mxu0 0.0
    %862 = vmatpush2.msra.mxu0 0.0
    %863 = vmatprep.subr.mxu0 0.0
    %864 = vmatpush2.msra.mxu0 0.0
    %865 = vmatprep.mubr.f32.mxu0 0.0
    %v866 = vand.u32 %v589, 4294901760
    %v867 = vsub.f32 %v589, %v866
    %868 = vmatmul.mubr.f32.gmra.mxu0 %v867
    %v869 = vpop.f32.mrf.mxu0
    %v870 = vadd.f32 %v782, %v869
    %v871 = vpop.f32.mrf.mxu0
    %872 = vdwg.mxu0
    %873 = vmatprep.subr.mxu0 0.0
    %874 = vmatpush1.msra.mxu0 0.0
    %875 = vmatprep.subr.mxu0 0.0
    %876 = vmatpush1.msra.mxu0 0.0
    %877 = vmatprep.subr.mxu0 0.0
    %878 = vmatpush1.msra.mxu0 0.0
    %879 = vmatprep.subr.mxu0 0.0
    %880 = vmatpush1.msra.mxu0 0.0
    %881 = vmatprep.subr.mxu0 0.0
    %882 = vmatpush1.msra.mxu0 0.0
    %883 = vmatprep.subr.mxu0 0.0
    %884 = vmatpush1.msra.mxu0 0.0
    %885 = vmatprep.subr.mxu0 0.0
    %886 = vmatpush1.msra.mxu0 0.0
    %887 = vmatprep.subr.mxu0 0.0
    %888 = vmatpush1.msra.mxu0 0.0
    %889 = vmatprep.subr.mxu0 0.0
    %v890 = vand.u32 %v22, 4294901760
    %891 = vmatpush1.msra.mxu0 %v890
    %892 = vmatprep.subr.mxu0 0.0
    %v893 = vand.u32 %v21, 4294901760
    %894 = vmatpush1.msra.mxu0 %v893
    %895 = vmatprep.subr.mxu0 0.0
    %v896 = vand.u32 %v20, 4294901760
    %897 = vmatpush1.msra.mxu0 %v896
    %898 = vmatprep.subr.mxu0 0.0
    %v899 = vand.u32 %v19, 4294901760
    %900 = vmatpush1.msra.mxu0 %v899
    %901 = vmatprep.subr.mxu0 0.0
    %v902 = vand.u32 %v18, 4294901760
    %903 = vmatpush1.msra.mxu0 %v902
    %904 = vmatprep.subr.mxu0 0.0
    %v905 = vand.u32 %v17, 4294901760
    %906 = vmatpush1.msra.mxu0 %v905
    %907 = vmatprep.subr.mxu0 0.0
    %v908 = vand.u32 %v16, 4294901760
    %909 = vmatpush1.msra.mxu0 %v908
    %910 = vmatprep.subr.mxu0 0.0
    %v911 = vand.u32 %v15, 4294901760
    %912 = vmatpush1.msra.mxu0 %v911
    %913 = vmatprep.subr.mxu0 0.0
    %914 = vmatpush2.msra.mxu0 0.0
    %915 = vmatprep.subr.mxu0 0.0
    %916 = vmatpush2.msra.mxu0 0.0
    %917 = vmatprep.subr.mxu0 0.0
    %918 = vmatpush2.msra.mxu0 0.0
    %919 = vmatprep.subr.mxu0 0.0
    %920 = vmatpush2.msra.mxu0 0.0
    %921 = vmatprep.subr.mxu0 0.0
    %922 = vmatpush2.msra.mxu0 0.0
    %923 = vmatprep.subr.mxu0 0.0
    %924 = vmatpush2.msra.mxu0 0.0
    %925 = vmatprep.subr.mxu0 0.0
    %926 = vmatpush2.msra.mxu0 0.0
    %927 = vmatprep.subr.mxu0 0.0
    %928 = vmatpush2.msra.mxu0 0.0
    %929 = vmatprep.subr.mxu0 0.0
    %930 = vmatpush2.msra.mxu0 0.0
    %931 = vmatprep.subr.mxu0 0.0
    %932 = vmatpush2.msra.mxu0 0.0
    %933 = vmatprep.subr.mxu0 0.0
    %934 = vmatpush2.msra.mxu0 0.0
    %935 = vmatprep.subr.mxu0 0.0
    %936 = vmatpush2.msra.mxu0 0.0
    %937 = vmatprep.subr.mxu0 0.0
    %938 = vmatpush2.msra.mxu0 0.0
    %939 = vmatprep.subr.mxu0 0.0
    %940 = vmatpush2.msra.mxu0 0.0
    %941 = vmatprep.subr.mxu0 0.0
    %942 = vmatpush2.msra.mxu0 0.0
    %943 = vmatprep.subr.mxu0 0.0
    %944 = vmatpush2.msra.mxu0 0.0
    %945 = vmatprep.mubr.f32.mxu0 0.0
    %v946 = vand.u32 %v589, 4294901760
    %v947 = vsub.f32 %v589, %v946
    %v948 = vand.u32 %v947, 4294901760
    %949 = vmatmul.mubr.f32.gmra.mxu0 %v948
    %v950 = vpop.f32.mrf.mxu0
    %v951 = vadd.f32 %v870, %v950
    %v952 = vpop.f32.mrf.mxu0
    %953 = vdwg.mxu0
    %954 = vmatprep.subr.mxu0 0.0
    %955 = vmatpush1.msra.mxu0 0.0
    %956 = vmatprep.subr.mxu0 0.0
    %957 = vmatpush1.msra.mxu0 0.0
    %958 = vmatprep.subr.mxu0 0.0
    %959 = vmatpush1.msra.mxu0 0.0
    %960 = vmatprep.subr.mxu0 0.0
    %961 = vmatpush1.msra.mxu0 0.0
    %962 = vmatprep.subr.mxu0 0.0
    %963 = vmatpush1.msra.mxu0 0.0
    %964 = vmatprep.subr.mxu0 0.0
    %965 = vmatpush1.msra.mxu0 0.0
    %966 = vmatprep.subr.mxu0 0.0
    %967 = vmatpush1.msra.mxu0 0.0
    %968 = vmatprep.subr.mxu0 0.0
    %969 = vmatpush1.msra.mxu0 0.0
    %970 = vmatprep.subr.mxu0 0.0
    %v971 = vand.u32 %v22, 4294901760
    %v972 = vsub.f32 %v22, %v971
    %v973 = vand.u32 %v972, 4294901760
    %974 = vmatpush1.msra.mxu0 %v973
    %975 = vmatprep.subr.mxu0 0.0
    %v976 = vand.u32 %v21, 4294901760
    %v977 = vsub.f32 %v21, %v976
    %v978 = vand.u32 %v977, 4294901760
    %979 = vmatpush1.msra.mxu0 %v978
    %980 = vmatprep.subr.mxu0 0.0
    %v981 = vand.u32 %v20, 4294901760
    %v982 = vsub.f32 %v20, %v981
    %v983 = vand.u32 %v982, 4294901760
    %984 = vmatpush1.msra.mxu0 %v983
    %985 = vmatprep.subr.mxu0 0.0
    %v986 = vand.u32 %v19, 4294901760
    %v987 = vsub.f32 %v19, %v986
    %v988 = vand.u32 %v987, 4294901760
    %989 = vmatpush1.msra.mxu0 %v988
    %990 = vmatprep.subr.mxu0 0.0
    %v991 = vand.u32 %v18, 4294901760
    %v992 = vsub.f32 %v18, %v991
    %v993 = vand.u32 %v992, 4294901760
    %994 = vmatpush1.msra.mxu0 %v993
    %995 = vmatprep.subr.mxu0 0.0
    %v996 = vand.u32 %v17, 4294901760
    %v997 = vsub.f32 %v17, %v996
    %v998 = vand.u32 %v997, 4294901760
    %999 = vmatpush1.msra.mxu0 %v998
    %1000 = vmatprep.subr.mxu0 0.0
    %v1001 = vand.u32 %v16, 4294901760
    %v1002 = vsub.f32 %v16, %v1001
    %v1003 = vand.u32 %v1002, 4294901760
    %1004 = vmatpush1.msra.mxu0 %v1003
    %1005 = vmatprep.subr.mxu0 0.0
    %v1006 = vand.u32 %v15, 4294901760
    %v1007 = vsub.f32 %v15, %v1006
    %v1008 = vand.u32 %v1007, 4294901760
    %1009 = vmatpush1.msra.mxu0 %v1008
    %1010 = vmatprep.subr.mxu0 0.0
    %1011 = vmatpush2.msra.mxu0 0.0
    %1012 = vmatprep.subr.mxu0 0.0
    %1013 = vmatpush2.msra.mxu0 0.0
    %1014 = vmatprep.subr.mxu0 0.0
    %1015 = vmatpush2.msra.mxu0 0.0
    %1016 = vmatprep.subr.mxu0 0.0
    %1017 = vmatpush2.msra.mxu0 0.0
    %1018 = vmatprep.subr.mxu0 0.0
    %1019 = vmatpush2.msra.mxu0 0.0
    %1020 = vmatprep.subr.mxu0 0.0
    %1021 = vmatpush2.msra.mxu0 0.0
    %1022 = vmatprep.subr.mxu0 0.0
    %1023 = vmatpush2.msra.mxu0 0.0
    %1024 = vmatprep.subr.mxu0 0.0
    %1025 = vmatpush2.msra.mxu0 0.0
    %1026 = vmatprep.subr.mxu0 0.0
    %1027 = vmatpush2.msra.mxu0 0.0
    %1028 = vmatprep.subr.mxu0 0.0
    %1029 = vmatpush2.msra.mxu0 0.0
    %1030 = vmatprep.subr.mxu0 0.0
    %1031 = vmatpush2.msra.mxu0 0.0
    %1032 = vmatprep.subr.mxu0 0.0
    %1033 = vmatpush2.msra.mxu0 0.0
    %1034 = vmatprep.subr.mxu0 0.0
    %1035 = vmatpush2.msra.mxu0 0.0
    %1036 = vmatprep.subr.mxu0 0.0
    %1037 = vmatpush2.msra.mxu0 0.0
    %1038 = vmatprep.subr.mxu0 0.0
    %1039 = vmatpush2.msra.mxu0 0.0
    %1040 = vmatprep.subr.mxu0 0.0
    %1041 = vmatpush2.msra.mxu0 0.0
    %1042 = vmatprep.mubr.f32.mxu0 0.0
    %v1043 = vand.u32 %v589, 4294901760
    %1044 = vmatmul.mubr.f32.gmra.mxu0 %v1043
    %v1045 = vpop.f32.mrf.mxu0
    %v1046 = vadd.f32 %v951, %v1045
    %v1047 = vpop.f32.mrf.mxu0
    %1048 = vdwg.mxu0
    %1049 = vmatprep.subr.mxu0 0.0
    %1050 = vmatpush1.msra.mxu0 0.0
    %1051 = vmatprep.subr.mxu0 0.0
    %1052 = vmatpush1.msra.mxu0 0.0
    %1053 = vmatprep.subr.mxu0 0.0
    %1054 = vmatpush1.msra.mxu0 0.0
    %1055 = vmatprep.subr.mxu0 0.0
    %1056 = vmatpush1.msra.mxu0 0.0
    %1057 = vmatprep.subr.mxu0 0.0
    %1058 = vmatpush1.msra.mxu0 0.0
    %1059 = vmatprep.subr.mxu0 0.0
    %1060 = vmatpush1.msra.mxu0 0.0
    %1061 = vmatprep.subr.mxu0 0.0
    %1062 = vmatpush1.msra.mxu0 0.0
    %1063 = vmatprep.subr.mxu0 0.0
    %1064 = vmatpush1.msra.mxu0 0.0
    %1065 = vmatprep.subr.mxu0 0.0
    %v1066 = vand.u32 %v22, 4294901760
    %1067 = vmatpush1.msra.mxu0 %v1066
    %1068 = vmatprep.subr.mxu0 0.0
    %v1069 = vand.u32 %v21, 4294901760
    %1070 = vmatpush1.msra.mxu0 %v1069
    %1071 = vmatprep.subr.mxu0 0.0
    %v1072 = vand.u32 %v20, 4294901760
    %1073 = vmatpush1.msra.mxu0 %v1072
    %1074 = vmatprep.subr.mxu0 0.0
    %v1075 = vand.u32 %v19, 4294901760
    %1076 = vmatpush1.msra.mxu0 %v1075
    %1077 = vmatprep.subr.mxu0 0.0
    %v1078 = vand.u32 %v18, 4294901760
    %1079 = vmatpush1.msra.mxu0 %v1078
    %1080 = vmatprep.subr.mxu0 0.0
    %v1081 = vand.u32 %v17, 4294901760
    %1082 = vmatpush1.msra.mxu0 %v1081
    %1083 = vmatprep.subr.mxu0 0.0
    %v1084 = vand.u32 %v16, 4294901760
    %1085 = vmatpush1.msra.mxu0 %v1084
    %1086 = vmatprep.subr.mxu0 0.0
    %v1087 = vand.u32 %v15, 4294901760
    %1088 = vmatpush1.msra.mxu0 %v1087
    %1089 = vmatprep.subr.mxu0 0.0
    %1090 = vmatpush2.msra.mxu0 0.0
    %1091 = vmatprep.subr.mxu0 0.0
    %1092 = vmatpush2.msra.mxu0 0.0
    %1093 = vmatprep.subr.mxu0 0.0
    %1094 = vmatpush2.msra.mxu0 0.0
    %1095 = vmatprep.subr.mxu0 0.0
    %1096 = vmatpush2.msra.mxu0 0.0
    %1097 = vmatprep.subr.mxu0 0.0
    %1098 = vmatpush2.msra.mxu0 0.0
    %1099 = vmatprep.subr.mxu0 0.0
    %1100 = vmatpush2.msra.mxu0 0.0
    %1101 = vmatprep.subr.mxu0 0.0
    %1102 = vmatpush2.msra.mxu0 0.0
    %1103 = vmatprep.subr.mxu0 0.0
    %1104 = vmatpush2.msra.mxu0 0.0
    %1105 = vmatprep.subr.mxu0 0.0
    %1106 = vmatpush2.msra.mxu0 0.0
    %1107 = vmatprep.subr.mxu0 0.0
    %1108 = vmatpush2.msra.mxu0 0.0
    %1109 = vmatprep.subr.mxu0 0.0
    %1110 = vmatpush2.msra.mxu0 0.0
    %1111 = vmatprep.subr.mxu0 0.0
    %1112 = vmatpush2.msra.mxu0 0.0
    %1113 = vmatprep.subr.mxu0 0.0
    %1114 = vmatpush2.msra.mxu0 0.0
    %1115 = vmatprep.subr.mxu0 0.0
    %1116 = vmatpush2.msra.mxu0 0.0
    %1117 = vmatprep.subr.mxu0 0.0
    %1118 = vmatpush2.msra.mxu0 0.0
    %1119 = vmatprep.subr.mxu0 0.0
    %1120 = vmatpush2.msra.mxu0 0.0
    %1121 = vmatprep.mubr.f32.mxu0 0.0
    %v1122 = vand.u32 %v589, 4294901760
    %1123 = vmatmul.mubr.f32.gmra.mxu0 %v1122
    %v1124 = vpop.f32.mrf.mxu0
    %v1125 = vadd.f32 %v1046, %v1124
    %v1126 = vpop.f32.mrf.mxu0
    %1127 = vdwg.mxu0
    %v1128 = vmul.f32 %v1125, 5.656854
    %1130 = vrot.lane.b32.xlu0 %v23, 96
    %v1131 = vpop.permute.xlu0 %1130
    %v1133 = vadd.f32 %v1128, %v1131
    %1135 = vrot.lane.b32.xlu0 %v1133, 32
    %v1136 = vpop.permute.xlu0 %1135
    %vm1138 = vcmask 519424
    %1139 = vst.msk [vmem:[#allocation2] sm:$0xf] %vm1138, %v1136
    %1140 = vset.pattern.permute.xlu0 2
    %1141 = vperm.xlu0 %1140, %v28
    %v1142 = vpop.permute.xlu0 %1141
    %vm1143 = vcmp.eq.s32.totalorder %v1142, %v30
    %v1144 = vsel %vm1143, 1, 0
    %v1145 = vcvt.s32.f32 %v1144
    %v1147 = vsel %vm37, %v1145, 0
    %1149 = vmatprep.subr.mxu0 0.0
    %1150 = vmatpush1.msra.mxu0 0.0
    %1151 = vmatprep.subr.mxu0 0.0
    %1152 = vmatpush1.msra.mxu0 0.0
    %1153 = vmatprep.subr.mxu0 0.0
    %1154 = vmatpush1.msra.mxu0 0.0
    %1155 = vmatprep.subr.mxu0 0.0
    %1156 = vmatpush1.msra.mxu0 0.0
    %1157 = vmatprep.subr.mxu0 0.0
    %1158 = vmatpush1.msra.mxu0 0.0
    %1159 = vmatprep.subr.mxu0 0.0
    %1160 = vmatpush1.msra.mxu0 0.0
    %1161 = vmatprep.subr.mxu0 0.0
    %1162 = vmatpush1.msra.mxu0 0.0
    %1163 = vmatprep.subr.mxu0 0.0
    %1164 = vmatpush1.msra.mxu0 0.0
    %1165 = vmatprep.subr.mxu0 0.0
    %v1166 = vand.u32 %v22, 4294901760
    %1167 = vmatpush1.msra.mxu0 %v1166
    %1168 = vmatprep.subr.mxu0 0.0
    %v1169 = vand.u32 %v21, 4294901760
    %1170 = vmatpush1.msra.mxu0 %v1169
    %1171 = vmatprep.subr.mxu0 0.0
    %v1172 = vand.u32 %v20, 4294901760
    %1173 = vmatpush1.msra.mxu0 %v1172
    %1174 = vmatprep.subr.mxu0 0.0
    %v1175 = vand.u32 %v19, 4294901760
    %1176 = vmatpush1.msra.mxu0 %v1175
    %1177 = vmatprep.subr.mxu0 0.0
    %v1178 = vand.u32 %v18, 4294901760
    %1179 = vmatpush1.msra.mxu0 %v1178
    %1180 = vmatprep.subr.mxu0 0.0
    %v1181 = vand.u32 %v17, 4294901760
    %1182 = vmatpush1.msra.mxu0 %v1181
    %1183 = vmatprep.subr.mxu0 0.0
    %v1184 = vand.u32 %v16, 4294901760
    %1185 = vmatpush1.msra.mxu0 %v1184
    %1186 = vmatprep.subr.mxu0 0.0
    %v1187 = vand.u32 %v15, 4294901760
    %1188 = vmatpush1.msra.mxu0 %v1187
    %1189 = vmatprep.subr.mxu0 0.0
    %1190 = vmatpush2.msra.mxu0 0.0
    %1191 = vmatprep.subr.mxu0 0.0
    %1192 = vmatpush2.msra.mxu0 0.0
    %1193 = vmatprep.subr.mxu0 0.0
    %1194 = vmatpush2.msra.mxu0 0.0
    %1195 = vmatprep.subr.mxu0 0.0
    %1196 = vmatpush2.msra.mxu0 0.0
    %1197 = vmatprep.subr.mxu0 0.0
    %1198 = vmatpush2.msra.mxu0 0.0
    %1199 = vmatprep.subr.mxu0 0.0
    %1200 = vmatpush2.msra.mxu0 0.0
    %1201 = vmatprep.subr.mxu0 0.0
    %1202 = vmatpush2.msra.mxu0 0.0
    %1203 = vmatprep.subr.mxu0 0.0
    %1204 = vmatpush2.msra.mxu0 0.0
    %1205 = vmatprep.subr.mxu0 0.0
    %1206 = vmatpush2.msra.mxu0 0.0
    %1207 = vmatprep.subr.mxu0 0.0
    %1208 = vmatpush2.msra.mxu0 0.0
    %1209 = vmatprep.subr.mxu0 0.0
    %1210 = vmatpush2.msra.mxu0 0.0
    %1211 = vmatprep.subr.mxu0 0.0
    %1212 = vmatpush2.msra.mxu0 0.0
    %1213 = vmatprep.subr.mxu0 0.0
    %1214 = vmatpush2.msra.mxu0 0.0
    %1215 = vmatprep.subr.mxu0 0.0
    %1216 = vmatpush2.msra.mxu0 0.0
    %1217 = vmatprep.subr.mxu0 0.0
    %1218 = vmatpush2.msra.mxu0 0.0
    %1219 = vmatprep.subr.mxu0 0.0
    %1220 = vmatpush2.msra.mxu0 0.0
    %1221 = vmatprep.mubr.f32.mxu0 0.0
    %v1222 = vand.u32 %v1147, 4294901760
    %v1223 = vsub.f32 %v1147, %v1222
    %v1224 = vand.u32 %v1223, 4294901760
    %v1225 = vsub.f32 %v1223, %v1224
    %v1226 = vand.u32 %v1225, 4294901760
    %1227 = vmatmul.mubr.f32.gmra.mxu0 %v1226
    %v1228 = vpop.f32.mrf.mxu0
    %v1229 = vadd.f32 0.0, %v1228
    %v1230 = vpop.f32.mrf.mxu0
    %1231 = vdwg.mxu0
    %1232 = vmatprep.subr.mxu0 0.0
    %1233 = vmatpush1.msra.mxu0 0.0
    %1234 = vmatprep.subr.mxu0 0.0
    %1235 = vmatpush1.msra.mxu0 0.0
    %1236 = vmatprep.subr.mxu0 0.0
    %1237 = vmatpush1.msra.mxu0 0.0
    %1238 = vmatprep.subr.mxu0 0.0
    %1239 = vmatpush1.msra.mxu0 0.0
    %1240 = vmatprep.subr.mxu0 0.0
    %1241 = vmatpush1.msra.mxu0 0.0
    %1242 = vmatprep.subr.mxu0 0.0
    %1243 = vmatpush1.msra.mxu0 0.0
    %1244 = vmatprep.subr.mxu0 0.0
    %1245 = vmatpush1.msra.mxu0 0.0
    %1246 = vmatprep.subr.mxu0 0.0
    %1247 = vmatpush1.msra.mxu0 0.0
    %1248 = vmatprep.subr.mxu0 0.0
    %v1249 = vand.u32 %v22, 4294901760
    %v1250 = vsub.f32 %v22, %v1249
    %v1251 = vand.u32 %v1250, 4294901760
    %v1252 = vsub.f32 %v1250, %v1251
    %v1253 = vand.u32 %v1252, 4294901760
    %1254 = vmatpush1.msra.mxu0 %v1253
    %1255 = vmatprep.subr.mxu0 0.0
    %v1256 = vand.u32 %v21, 4294901760
    %v1257 = vsub.f32 %v21, %v1256
    %v1258 = vand.u32 %v1257, 4294901760
    %v1259 = vsub.f32 %v1257, %v1258
    %v1260 = vand.u32 %v1259, 4294901760
    %1261 = vmatpush1.msra.mxu0 %v1260
    %1262 = vmatprep.subr.mxu0 0.0
    %v1263 = vand.u32 %v20, 4294901760
    %v1264 = vsub.f32 %v20, %v1263
    %v1265 = vand.u32 %v1264, 4294901760
    %v1266 = vsub.f32 %v1264, %v1265
    %v1267 = vand.u32 %v1266, 4294901760
    %1268 = vmatpush1.msra.mxu0 %v1267
    %1269 = vmatprep.subr.mxu0 0.0
    %v1270 = vand.u32 %v19, 4294901760
    %v1271 = vsub.f32 %v19, %v1270
    %v1272 = vand.u32 %v1271, 4294901760
    %v1273 = vsub.f32 %v1271, %v1272
    %v1274 = vand.u32 %v1273, 4294901760
    %1275 = vmatpush1.msra.mxu0 %v1274
    %1276 = vmatprep.subr.mxu0 0.0
    %v1277 = vand.u32 %v18, 4294901760
    %v1278 = vsub.f32 %v18, %v1277
    %v1279 = vand.u32 %v1278, 4294901760
    %v1280 = vsub.f32 %v1278, %v1279
    %v1281 = vand.u32 %v1280, 4294901760
    %1282 = vmatpush1.msra.mxu0 %v1281
    %1283 = vmatprep.subr.mxu0 0.0
    %v1284 = vand.u32 %v17, 4294901760
    %v1285 = vsub.f32 %v17, %v1284
    %v1286 = vand.u32 %v1285, 4294901760
    %v1287 = vsub.f32 %v1285, %v1286
    %v1288 = vand.u32 %v1287, 4294901760
    %1289 = vmatpush1.msra.mxu0 %v1288
    %1290 = vmatprep.subr.mxu0 0.0
    %v1291 = vand.u32 %v16, 4294901760
    %v1292 = vsub.f32 %v16, %v1291
    %v1293 = vand.u32 %v1292, 4294901760
    %v1294 = vsub.f32 %v1292, %v1293
    %v1295 = vand.u32 %v1294, 4294901760
    %1296 = vmatpush1.msra.mxu0 %v1295
    %1297 = vmatprep.subr.mxu0 0.0
    %v1298 = vand.u32 %v15, 4294901760
    %v1299 = vsub.f32 %v15, %v1298
    %v1300 = vand.u32 %v1299, 4294901760
    %v1301 = vsub.f32 %v1299, %v1300
    %v1302 = vand.u32 %v1301, 4294901760
    %1303 = vmatpush1.msra.mxu0 %v1302
    %1304 = vmatprep.subr.mxu0 0.0
    %1305 = vmatpush2.msra.mxu0 0.0
    %1306 = vmatprep.subr.mxu0 0.0
    %1307 = vmatpush2.msra.mxu0 0.0
    %1308 = vmatprep.subr.mxu0 0.0
    %1309 = vmatpush2.msra.mxu0 0.0
    %1310 = vmatprep.subr.mxu0 0.0
    %1311 = vmatpush2.msra.mxu0 0.0
    %1312 = vmatprep.subr.mxu0 0.0
    %1313 = vmatpush2.msra.mxu0 0.0
    %1314 = vmatprep.subr.mxu0 0.0
    %1315 = vmatpush2.msra.mxu0 0.0
    %1316 = vmatprep.subr.mxu0 0.0
    %1317 = vmatpush2.msra.mxu0 0.0
    %1318 = vmatprep.subr.mxu0 0.0
    %1319 = vmatpush2.msra.mxu0 0.0
    %1320 = vmatprep.subr.mxu0 0.0
    %1321 = vmatpush2.msra.mxu0 0.0
    %1322 = vmatprep.subr.mxu0 0.0
    %1323 = vmatpush2.msra.mxu0 0.0
    %1324 = vmatprep.subr.mxu0 0.0
    %1325 = vmatpush2.msra.mxu0 0.0
    %1326 = vmatprep.subr.mxu0 0.0
    %1327 = vmatpush2.msra.mxu0 0.0
    %1328 = vmatprep.subr.mxu0 0.0
    %1329 = vmatpush2.msra.mxu0 0.0
    %1330 = vmatprep.subr.mxu0 0.0
    %1331 = vmatpush2.msra.mxu0 0.0
    %1332 = vmatprep.subr.mxu0 0.0
    %1333 = vmatpush2.msra.mxu0 0.0
    %1334 = vmatprep.subr.mxu0 0.0
    %1335 = vmatpush2.msra.mxu0 0.0
    %1336 = vmatprep.mubr.f32.mxu0 0.0
    %v1337 = vand.u32 %v1147, 4294901760
    %1338 = vmatmul.mubr.f32.gmra.mxu0 %v1337
    %v1339 = vpop.f32.mrf.mxu0
    %v1340 = vadd.f32 %v1229, %v1339
    %v1341 = vpop.f32.mrf.mxu0
    %1342 = vdwg.mxu0
    %1343 = vmatprep.subr.mxu0 0.0
    %1344 = vmatpush1.msra.mxu0 0.0
    %1345 = vmatprep.subr.mxu0 0.0
    %1346 = vmatpush1.msra.mxu0 0.0
    %1347 = vmatprep.subr.mxu0 0.0
    %1348 = vmatpush1.msra.mxu0 0.0
    %1349 = vmatprep.subr.mxu0 0.0
    %1350 = vmatpush1.msra.mxu0 0.0
    %1351 = vmatprep.subr.mxu0 0.0
    %1352 = vmatpush1.msra.mxu0 0.0
    %1353 = vmatprep.subr.mxu0 0.0
    %1354 = vmatpush1.msra.mxu0 0.0
    %1355 = vmatprep.subr.mxu0 0.0
    %1356 = vmatpush1.msra.mxu0 0.0
    %1357 = vmatprep.subr.mxu0 0.0
    %1358 = vmatpush1.msra.mxu0 0.0
    %1359 = vmatprep.subr.mxu0 0.0
    %v1360 = vand.u32 %v22, 4294901760
    %v1361 = vsub.f32 %v22, %v1360
    %1362 = vmatpush1.msra.mxu0 %v1361
    %1363 = vmatprep.subr.mxu0 0.0
    %v1364 = vand.u32 %v21, 4294901760
    %v1365 = vsub.f32 %v21, %v1364
    %1366 = vmatpush1.msra.mxu0 %v1365
    %1367 = vmatprep.subr.mxu0 0.0
    %v1368 = vand.u32 %v20, 4294901760
    %v1369 = vsub.f32 %v20, %v1368
    %1370 = vmatpush1.msra.mxu0 %v1369
    %1371 = vmatprep.subr.mxu0 0.0
    %v1372 = vand.u32 %v19, 4294901760
    %v1373 = vsub.f32 %v19, %v1372
    %1374 = vmatpush1.msra.mxu0 %v1373
    %1375 = vmatprep.subr.mxu0 0.0
    %v1376 = vand.u32 %v18, 4294901760
    %v1377 = vsub.f32 %v18, %v1376
    %1378 = vmatpush1.msra.mxu0 %v1377
    %1379 = vmatprep.subr.mxu0 0.0
    %v1380 = vand.u32 %v17, 4294901760
    %v1381 = vsub.f32 %v17, %v1380
    %1382 = vmatpush1.msra.mxu0 %v1381
    %1383 = vmatprep.subr.mxu0 0.0
    %v1384 = vand.u32 %v16, 4294901760
    %v1385 = vsub.f32 %v16, %v1384
    %1386 = vmatpush1.msra.mxu0 %v1385
    %1387 = vmatprep.subr.mxu0 0.0
    %v1388 = vand.u32 %v15, 4294901760
    %v1389 = vsub.f32 %v15, %v1388
    %1390 = vmatpush1.msra.mxu0 %v1389
    %1391 = vmatprep.subr.mxu0 0.0
    %1392 = vmatpush2.msra.mxu0 0.0
    %1393 = vmatprep.subr.mxu0 0.0
    %1394 = vmatpush2.msra.mxu0 0.0
    %1395 = vmatprep.subr.mxu0 0.0
    %1396 = vmatpush2.msra.mxu0 0.0
    %1397 = vmatprep.subr.mxu0 0.0
    %1398 = vmatpush2.msra.mxu0 0.0
    %1399 = vmatprep.subr.mxu0 0.0
    %1400 = vmatpush2.msra.mxu0 0.0
    %1401 = vmatprep.subr.mxu0 0.0
    %1402 = vmatpush2.msra.mxu0 0.0
    %1403 = vmatprep.subr.mxu0 0.0
    %1404 = vmatpush2.msra.mxu0 0.0
    %1405 = vmatprep.subr.mxu0 0.0
    %1406 = vmatpush2.msra.mxu0 0.0
    %1407 = vmatprep.subr.mxu0 0.0
    %1408 = vmatpush2.msra.mxu0 0.0
    %1409 = vmatprep.subr.mxu0 0.0
    %1410 = vmatpush2.msra.mxu0 0.0
    %1411 = vmatprep.subr.mxu0 0.0
    %1412 = vmatpush2.msra.mxu0 0.0
    %1413 = vmatprep.subr.mxu0 0.0
    %1414 = vmatpush2.msra.mxu0 0.0
    %1415 = vmatprep.subr.mxu0 0.0
    %1416 = vmatpush2.msra.mxu0 0.0
    %1417 = vmatprep.subr.mxu0 0.0
    %1418 = vmatpush2.msra.mxu0 0.0
    %1419 = vmatprep.subr.mxu0 0.0
    %1420 = vmatpush2.msra.mxu0 0.0
    %1421 = vmatprep.subr.mxu0 0.0
    %1422 = vmatpush2.msra.mxu0 0.0
    %1423 = vmatprep.mubr.f32.mxu0 0.0
    %v1424 = vand.u32 %v1147, 4294901760
    %v1425 = vsub.f32 %v1147, %v1424
    %1426 = vmatmul.mubr.f32.gmra.mxu0 %v1425
    %v1427 = vpop.f32.mrf.mxu0
    %v1428 = vadd.f32 %v1340, %v1427
    %v1429 = vpop.f32.mrf.mxu0
    %1430 = vdwg.mxu0
    %1431 = vmatprep.subr.mxu0 0.0
    %1432 = vmatpush1.msra.mxu0 0.0
    %1433 = vmatprep.subr.mxu0 0.0
    %1434 = vmatpush1.msra.mxu0 0.0
    %1435 = vmatprep.subr.mxu0 0.0
    %1436 = vmatpush1.msra.mxu0 0.0
    %1437 = vmatprep.subr.mxu0 0.0
    %1438 = vmatpush1.msra.mxu0 0.0
    %1439 = vmatprep.subr.mxu0 0.0
    %1440 = vmatpush1.msra.mxu0 0.0
    %1441 = vmatprep.subr.mxu0 0.0
    %1442 = vmatpush1.msra.mxu0 0.0
    %1443 = vmatprep.subr.mxu0 0.0
    %1444 = vmatpush1.msra.mxu0 0.0
    %1445 = vmatprep.subr.mxu0 0.0
    %1446 = vmatpush1.msra.mxu0 0.0
    %1447 = vmatprep.subr.mxu0 0.0
    %v1448 = vand.u32 %v22, 4294901760
    %1449 = vmatpush1.msra.mxu0 %v1448
    %1450 = vmatprep.subr.mxu0 0.0
    %v1451 = vand.u32 %v21, 4294901760
    %1452 = vmatpush1.msra.mxu0 %v1451
    %1453 = vmatprep.subr.mxu0 0.0
    %v1454 = vand.u32 %v20, 4294901760
    %1455 = vmatpush1.msra.mxu0 %v1454
    %1456 = vmatprep.subr.mxu0 0.0
    %v1457 = vand.u32 %v19, 4294901760
    %1458 = vmatpush1.msra.mxu0 %v1457
    %1459 = vmatprep.subr.mxu0 0.0
    %v1460 = vand.u32 %v18, 4294901760
    %1461 = vmatpush1.msra.mxu0 %v1460
    %1462 = vmatprep.subr.mxu0 0.0
    %v1463 = vand.u32 %v17, 4294901760
    %1464 = vmatpush1.msra.mxu0 %v1463
    %1465 = vmatprep.subr.mxu0 0.0
    %v1466 = vand.u32 %v16, 4294901760
    %1467 = vmatpush1.msra.mxu0 %v1466
    %1468 = vmatprep.subr.mxu0 0.0
    %v1469 = vand.u32 %v15, 4294901760
    %1470 = vmatpush1.msra.mxu0 %v1469
    %1471 = vmatprep.subr.mxu0 0.0
    %1472 = vmatpush2.msra.mxu0 0.0
    %1473 = vmatprep.subr.mxu0 0.0
    %1474 = vmatpush2.msra.mxu0 0.0
    %1475 = vmatprep.subr.mxu0 0.0
    %1476 = vmatpush2.msra.mxu0 0.0
    %1477 = vmatprep.subr.mxu0 0.0
    %1478 = vmatpush2.msra.mxu0 0.0
    %1479 = vmatprep.subr.mxu0 0.0
    %1480 = vmatpush2.msra.mxu0 0.0
    %1481 = vmatprep.subr.mxu0 0.0
    %1482 = vmatpush2.msra.mxu0 0.0
    %1483 = vmatprep.subr.mxu0 0.0
    %1484 = vmatpush2.msra.mxu0 0.0
    %1485 = vmatprep.subr.mxu0 0.0
    %1486 = vmatpush2.msra.mxu0 0.0
    %1487 = vmatprep.subr.mxu0 0.0
    %1488 = vmatpush2.msra.mxu0 0.0
    %1489 = vmatprep.subr.mxu0 0.0
    %1490 = vmatpush2.msra.mxu0 0.0
    %1491 = vmatprep.subr.mxu0 0.0
    %1492 = vmatpush2.msra.mxu0 0.0
    %1493 = vmatprep.subr.mxu0 0.0
    %1494 = vmatpush2.msra.mxu0 0.0
    %1495 = vmatprep.subr.mxu0 0.0
    %1496 = vmatpush2.msra.mxu0 0.0
    %1497 = vmatprep.subr.mxu0 0.0
    %1498 = vmatpush2.msra.mxu0 0.0
    %1499 = vmatprep.subr.mxu0 0.0
    %1500 = vmatpush2.msra.mxu0 0.0
    %1501 = vmatprep.subr.mxu0 0.0
    %1502 = vmatpush2.msra.mxu0 0.0
    %1503 = vmatprep.mubr.f32.mxu0 0.0
    %v1504 = vand.u32 %v1147, 4294901760
    %v1505 = vsub.f32 %v1147, %v1504
    %v1506 = vand.u32 %v1505, 4294901760
    %1507 = vmatmul.mubr.f32.gmra.mxu0 %v1506
    %v1508 = vpop.f32.mrf.mxu0
    %v1509 = vadd.f32 %v1428, %v1508
    %v1510 = vpop.f32.mrf.mxu0
    %1511 = vdwg.mxu0
    %1512 = vmatprep.subr.mxu0 0.0
    %1513 = vmatpush1.msra.mxu0 0.0
    %1514 = vmatprep.subr.mxu0 0.0
    %1515 = vmatpush1.msra.mxu0 0.0
    %1516 = vmatprep.subr.mxu0 0.0
    %1517 = vmatpush1.msra.mxu0 0.0
    %1518 = vmatprep.subr.mxu0 0.0
    %1519 = vmatpush1.msra.mxu0 0.0
    %1520 = vmatprep.subr.mxu0 0.0
    %1521 = vmatpush1.msra.mxu0 0.0
    %1522 = vmatprep.subr.mxu0 0.0
    %1523 = vmatpush1.msra.mxu0 0.0
    %1524 = vmatprep.subr.mxu0 0.0
    %1525 = vmatpush1.msra.mxu0 0.0
    %1526 = vmatprep.subr.mxu0 0.0
    %1527 = vmatpush1.msra.mxu0 0.0
    %1528 = vmatprep.subr.mxu0 0.0
    %v1529 = vand.u32 %v22, 4294901760
    %v1530 = vsub.f32 %v22, %v1529
    %v1531 = vand.u32 %v1530, 4294901760
    %1532 = vmatpush1.msra.mxu0 %v1531
    %1533 = vmatprep.subr.mxu0 0.0
    %v1534 = vand.u32 %v21, 4294901760
    %v1535 = vsub.f32 %v21, %v1534
    %v1536 = vand.u32 %v1535, 4294901760
    %1537 = vmatpush1.msra.mxu0 %v1536
    %1538 = vmatprep.subr.mxu0 0.0
    %v1539 = vand.u32 %v20, 4294901760
    %v1540 = vsub.f32 %v20, %v1539
    %v1541 = vand.u32 %v1540, 4294901760
    %1542 = vmatpush1.msra.mxu0 %v1541
    %1543 = vmatprep.subr.mxu0 0.0
    %v1544 = vand.u32 %v19, 4294901760
    %v1545 = vsub.f32 %v19, %v1544
    %v1546 = vand.u32 %v1545, 4294901760
    %1547 = vmatpush1.msra.mxu0 %v1546
    %1548 = vmatprep.subr.mxu0 0.0
    %v1549 = vand.u32 %v18, 4294901760
    %v1550 = vsub.f32 %v18, %v1549
    %v1551 = vand.u32 %v1550, 4294901760
    %1552 = vmatpush1.msra.mxu0 %v1551
    %1553 = vmatprep.subr.mxu0 0.0
    %v1554 = vand.u32 %v17, 4294901760
    %v1555 = vsub.f32 %v17, %v1554
    %v1556 = vand.u32 %v1555, 4294901760
    %1557 = vmatpush1.msra.mxu0 %v1556
    %1558 = vmatprep.subr.mxu0 0.0
    %v1559 = vand.u32 %v16, 4294901760
    %v1560 = vsub.f32 %v16, %v1559
    %v1561 = vand.u32 %v1560, 4294901760
    %1562 = vmatpush1.msra.mxu0 %v1561
    %1563 = vmatprep.subr.mxu0 0.0
    %v1564 = vand.u32 %v15, 4294901760
    %v1565 = vsub.f32 %v15, %v1564
    %v1566 = vand.u32 %v1565, 4294901760
    %1567 = vmatpush1.msra.mxu0 %v1566
    %1568 = vmatprep.subr.mxu0 0.0
    %1569 = vmatpush2.msra.mxu0 0.0
    %1570 = vmatprep.subr.mxu0 0.0
    %1571 = vmatpush2.msra.mxu0 0.0
    %1572 = vmatprep.subr.mxu0 0.0
    %1573 = vmatpush2.msra.mxu0 0.0
    %1574 = vmatprep.subr.mxu0 0.0
    %1575 = vmatpush2.msra.mxu0 0.0
    %1576 = vmatprep.subr.mxu0 0.0
    %1577 = vmatpush2.msra.mxu0 0.0
    %1578 = vmatprep.subr.mxu0 0.0
    %1579 = vmatpush2.msra.mxu0 0.0
    %1580 = vmatprep.subr.mxu0 0.0
    %1581 = vmatpush2.msra.mxu0 0.0
    %1582 = vmatprep.subr.mxu0 0.0
    %1583 = vmatpush2.msra.mxu0 0.0
    %1584 = vmatprep.subr.mxu0 0.0
    %1585 = vmatpush2.msra.mxu0 0.0
    %1586 = vmatprep.subr.mxu0 0.0
    %1587 = vmatpush2.msra.mxu0 0.0
    %1588 = vmatprep.subr.mxu0 0.0
    %1589 = vmatpush2.msra.mxu0 0.0
    %1590 = vmatprep.subr.mxu0 0.0
    %1591 = vmatpush2.msra.mxu0 0.0
    %1592 = vmatprep.subr.mxu0 0.0
    %1593 = vmatpush2.msra.mxu0 0.0
    %1594 = vmatprep.subr.mxu0 0.0
    %1595 = vmatpush2.msra.mxu0 0.0
    %1596 = vmatprep.subr.mxu0 0.0
    %1597 = vmatpush2.msra.mxu0 0.0
    %1598 = vmatprep.subr.mxu0 0.0
    %1599 = vmatpush2.msra.mxu0 0.0
    %1600 = vmatprep.mubr.f32.mxu0 0.0
    %v1601 = vand.u32 %v1147, 4294901760
    %1602 = vmatmul.mubr.f32.gmra.mxu0 %v1601
    %v1603 = vpop.f32.mrf.mxu0
    %v1604 = vadd.f32 %v1509, %v1603
    %v1605 = vpop.f32.mrf.mxu0
    %1606 = vdwg.mxu0
    %1607 = vmatprep.subr.mxu0 0.0
    %1608 = vmatpush1.msra.mxu0 0.0
    %1609 = vmatprep.subr.mxu0 0.0
    %1610 = vmatpush1.msra.mxu0 0.0
    %1611 = vmatprep.subr.mxu0 0.0
    %1612 = vmatpush1.msra.mxu0 0.0
    %1613 = vmatprep.subr.mxu0 0.0
    %1614 = vmatpush1.msra.mxu0 0.0
    %1615 = vmatprep.subr.mxu0 0.0
    %1616 = vmatpush1.msra.mxu0 0.0
    %1617 = vmatprep.subr.mxu0 0.0
    %1618 = vmatpush1.msra.mxu0 0.0
    %1619 = vmatprep.subr.mxu0 0.0
    %1620 = vmatpush1.msra.mxu0 0.0
    %1621 = vmatprep.subr.mxu0 0.0
    %1622 = vmatpush1.msra.mxu0 0.0
    %1623 = vmatprep.subr.mxu0 0.0
    %v1624 = vand.u32 %v22, 4294901760
    %1625 = vmatpush1.msra.mxu0 %v1624
    %1626 = vmatprep.subr.mxu0 0.0
    %v1627 = vand.u32 %v21, 4294901760
    %1628 = vmatpush1.msra.mxu0 %v1627
    %1629 = vmatprep.subr.mxu0 0.0
    %v1630 = vand.u32 %v20, 4294901760
    %1631 = vmatpush1.msra.mxu0 %v1630
    %1632 = vmatprep.subr.mxu0 0.0
    %v1633 = vand.u32 %v19, 4294901760
    %1634 = vmatpush1.msra.mxu0 %v1633
    %1635 = vmatprep.subr.mxu0 0.0
    %v1636 = vand.u32 %v18, 4294901760
    %1637 = vmatpush1.msra.mxu0 %v1636
    %1638 = vmatprep.subr.mxu0 0.0
    %v1639 = vand.u32 %v17, 4294901760
    %1640 = vmatpush1.msra.mxu0 %v1639
    %1641 = vmatprep.subr.mxu0 0.0
    %v1642 = vand.u32 %v16, 4294901760
    %1643 = vmatpush1.msra.mxu0 %v1642
    %1644 = vmatprep.subr.mxu0 0.0
    %v1645 = vand.u32 %v15, 4294901760
    %1646 = vmatpush1.msra.mxu0 %v1645
    %1647 = vmatprep.subr.mxu0 0.0
    %1648 = vmatpush2.msra.mxu0 0.0
    %1649 = vmatprep.subr.mxu0 0.0
    %1650 = vmatpush2.msra.mxu0 0.0
    %1651 = vmatprep.subr.mxu0 0.0
    %1652 = vmatpush2.msra.mxu0 0.0
    %1653 = vmatprep.subr.mxu0 0.0
    %1654 = vmatpush2.msra.mxu0 0.0
    %1655 = vmatprep.subr.mxu0 0.0
    %1656 = vmatpush2.msra.mxu0 0.0
    %1657 = vmatprep.subr.mxu0 0.0
    %1658 = vmatpush2.msra.mxu0 0.0
    %1659 = vmatprep.subr.mxu0 0.0
    %1660 = vmatpush2.msra.mxu0 0.0
    %1661 = vmatprep.subr.mxu0 0.0
    %1662 = vmatpush2.msra.mxu0 0.0
    %1663 = vmatprep.subr.mxu0 0.0
    %1664 = vmatpush2.msra.mxu0 0.0
    %1665 = vmatprep.subr.mxu0 0.0
    %1666 = vmatpush2.msra.mxu0 0.0
    %1667 = vmatprep.subr.mxu0 0.0
    %1668 = vmatpush2.msra.mxu0 0.0
    %1669 = vmatprep.subr.mxu0 0.0
    %1670 = vmatpush2.msra.mxu0 0.0
    %1671 = vmatprep.subr.mxu0 0.0
    %1672 = vmatpush2.msra.mxu0 0.0
    %1673 = vmatprep.subr.mxu0 0.0
    %1674 = vmatpush2.msra.mxu0 0.0
    %1675 = vmatprep.subr.mxu0 0.0
    %1676 = vmatpush2.msra.mxu0 0.0
    %1677 = vmatprep.subr.mxu0 0.0
    %1678 = vmatpush2.msra.mxu0 0.0
    %1679 = vmatprep.mubr.f32.mxu0 0.0
    %v1680 = vand.u32 %v1147, 4294901760
    %1681 = vmatmul.mubr.f32.gmra.mxu0 %v1680
    %v1682 = vpop.f32.mrf.mxu0
    %v1683 = vadd.f32 %v1604, %v1682
    %v1684 = vpop.f32.mrf.mxu0
    %1685 = vdwg.mxu0
    %v1686 = vmul.f32 %v1683, 5.656854
    %1687 = vrot.lane.b32.xlu0 %v23, 64
    %v1688 = vpop.permute.xlu0 %1687
    %v1690 = vadd.f32 %v1686, %v1688
    %1692 = vrot.lane.b32.xlu0 %v1690, 64
    %v1693 = vpop.permute.xlu0 %1692
    %vm1695 = vcmask 781824
    %1696 = vst.msk [vmem:[#allocation2] sm:$0xf] %vm1695, %v1693
    %1697 = vset.pattern.permute.xlu0 3
    %1698 = vperm.xlu0 %1697, %v28
    %v1699 = vpop.permute.xlu0 %1698
    %vm1700 = vcmp.eq.s32.totalorder %v1699, %v30
    %v1701 = vsel %vm1700, 1, 0
    %v1702 = vcvt.s32.f32 %v1701
    %v1704 = vsel %vm37, %v1702, 0
    %1706 = vmatprep.subr.mxu0 0.0
    %1707 = vmatpush1.msra.mxu0 0.0
    %1708 = vmatprep.subr.mxu0 0.0
    %1709 = vmatpush1.msra.mxu0 0.0
    %1710 = vmatprep.subr.mxu0 0.0
    %1711 = vmatpush1.msra.mxu0 0.0
    %1712 = vmatprep.subr.mxu0 0.0
    %1713 = vmatpush1.msra.mxu0 0.0
    %1714 = vmatprep.subr.mxu0 0.0
    %1715 = vmatpush1.msra.mxu0 0.0
    %1716 = vmatprep.subr.mxu0 0.0
    %1717 = vmatpush1.msra.mxu0 0.0
    %1718 = vmatprep.subr.mxu0 0.0
    %1719 = vmatpush1.msra.mxu0 0.0
    %1720 = vmatprep.subr.mxu0 0.0
    %1721 = vmatpush1.msra.mxu0 0.0
    %1722 = vmatprep.subr.mxu0 0.0
    %v1723 = vand.u32 %v22, 4294901760
    %1724 = vmatpush1.msra.mxu0 %v1723
    %1725 = vmatprep.subr.mxu0 0.0
    %v1726 = vand.u32 %v21, 4294901760
    %1727 = vmatpush1.msra.mxu0 %v1726
    %1728 = vmatprep.subr.mxu0 0.0
    %v1729 = vand.u32 %v20, 4294901760
    %1730 = vmatpush1.msra.mxu0 %v1729
    %1731 = vmatprep.subr.mxu0 0.0
    %v1732 = vand.u32 %v19, 4294901760
    %1733 = vmatpush1.msra.mxu0 %v1732
    %1734 = vmatprep.subr.mxu0 0.0
    %v1735 = vand.u32 %v18, 4294901760
    %1736 = vmatpush1.msra.mxu0 %v1735
    %1737 = vmatprep.subr.mxu0 0.0
    %v1738 = vand.u32 %v17, 4294901760
    %1739 = vmatpush1.msra.mxu0 %v1738
    %1740 = vmatprep.subr.mxu0 0.0
    %v1741 = vand.u32 %v16, 4294901760
    %1742 = vmatpush1.msra.mxu0 %v1741
    %1743 = vmatprep.subr.mxu0 0.0
    %v1744 = vand.u32 %v15, 4294901760
    %1745 = vmatpush1.msra.mxu0 %v1744
    %1746 = vmatprep.subr.mxu0 0.0
    %1747 = vmatpush2.msra.mxu0 0.0
    %1748 = vmatprep.subr.mxu0 0.0
    %1749 = vmatpush2.msra.mxu0 0.0
    %1750 = vmatprep.subr.mxu0 0.0
    %1751 = vmatpush2.msra.mxu0 0.0
    %1752 = vmatprep.subr.mxu0 0.0
    %1753 = vmatpush2.msra.mxu0 0.0
    %1754 = vmatprep.subr.mxu0 0.0
    %1755 = vmatpush2.msra.mxu0 0.0
    %1756 = vmatprep.subr.mxu0 0.0
    %1757 = vmatpush2.msra.mxu0 0.0
    %1758 = vmatprep.subr.mxu0 0.0
    %1759 = vmatpush2.msra.mxu0 0.0
    %1760 = vmatprep.subr.mxu0 0.0
    %1761 = vmatpush2.msra.mxu0 0.0
    %1762 = vmatprep.subr.mxu0 0.0
    %1763 = vmatpush2.msra.mxu0 0.0
    %1764 = vmatprep.subr.mxu0 0.0
    %1765 = vmatpush2.msra.mxu0 0.0
    %1766 = vmatprep.subr.mxu0 0.0
    %1767 = vmatpush2.msra.mxu0 0.0
    %1768 = vmatprep.subr.mxu0 0.0
    %1769 = vmatpush2.msra.mxu0 0.0
    %1770 = vmatprep.subr.mxu0 0.0
    %1771 = vmatpush2.msra.mxu0 0.0
    %1772 = vmatprep.subr.mxu0 0.0
    %1773 = vmatpush2.msra.mxu0 0.0
    %1774 = vmatprep.subr.mxu0 0.0
    %1775 = vmatpush2.msra.mxu0 0.0
    %1776 = vmatprep.subr.mxu0 0.0
    %1777 = vmatpush2.msra.mxu0 0.0
    %1778 = vmatprep.mubr.f32.mxu0 0.0
    %v1779 = vand.u32 %v1704, 4294901760
    %v1780 = vsub.f32 %v1704, %v1779
    %v1781 = vand.u32 %v1780, 4294901760
    %v1782 = vsub.f32 %v1780, %v1781
    %v1783 = vand.u32 %v1782, 4294901760
    %1784 = vmatmul.mubr.f32.gmra.mxu0 %v1783
    %v1785 = vpop.f32.mrf.mxu0
    %v1786 = vadd.f32 0.0, %v1785
    %v1787 = vpop.f32.mrf.mxu0
    %1788 = vdwg.mxu0
    %1789 = vmatprep.subr.mxu0 0.0
    %1790 = vmatpush1.msra.mxu0 0.0
    %1791 = vmatprep.subr.mxu0 0.0
    %1792 = vmatpush1.msra.mxu0 0.0
    %1793 = vmatprep.subr.mxu0 0.0
    %1794 = vmatpush1.msra.mxu0 0.0
    %1795 = vmatprep.subr.mxu0 0.0
    %1796 = vmatpush1.msra.mxu0 0.0
    %1797 = vmatprep.subr.mxu0 0.0
    %1798 = vmatpush1.msra.mxu0 0.0
    %1799 = vmatprep.subr.mxu0 0.0
    %1800 = vmatpush1.msra.mxu0 0.0
    %1801 = vmatprep.subr.mxu0 0.0
    %1802 = vmatpush1.msra.mxu0 0.0
    %1803 = vmatprep.subr.mxu0 0.0
    %1804 = vmatpush1.msra.mxu0 0.0
    %1805 = vmatprep.subr.mxu0 0.0
    %v1806 = vand.u32 %v22, 4294901760
    %v1807 = vsub.f32 %v22, %v1806
    %v1808 = vand.u32 %v1807, 4294901760
    %v1809 = vsub.f32 %v1807, %v1808
    %v1810 = vand.u32 %v1809, 4294901760
    %1811 = vmatpush1.msra.mxu0 %v1810
    %1812 = vmatprep.subr.mxu0 0.0
    %v1813 = vand.u32 %v21, 4294901760
    %v1814 = vsub.f32 %v21, %v1813
    %v1815 = vand.u32 %v1814, 4294901760
    %v1816 = vsub.f32 %v1814, %v1815
    %v1817 = vand.u32 %v1816, 4294901760
    %1818 = vmatpush1.msra.mxu0 %v1817
    %1819 = vmatprep.subr.mxu0 0.0
    %v1820 = vand.u32 %v20, 4294901760
    %v1821 = vsub.f32 %v20, %v1820
    %v1822 = vand.u32 %v1821, 4294901760
    %v1823 = vsub.f32 %v1821, %v1822
    %v1824 = vand.u32 %v1823, 4294901760
    %1825 = vmatpush1.msra.mxu0 %v1824
    %1826 = vmatprep.subr.mxu0 0.0
    %v1827 = vand.u32 %v19, 4294901760
    %v1828 = vsub.f32 %v19, %v1827
    %v1829 = vand.u32 %v1828, 4294901760
    %v1830 = vsub.f32 %v1828, %v1829
    %v1831 = vand.u32 %v1830, 4294901760
    %1832 = vmatpush1.msra.mxu0 %v1831
    %1833 = vmatprep.subr.mxu0 0.0
    %v1834 = vand.u32 %v18, 4294901760
    %v1835 = vsub.f32 %v18, %v1834
    %v1836 = vand.u32 %v1835, 4294901760
    %v1837 = vsub.f32 %v1835, %v1836
    %v1838 = vand.u32 %v1837, 4294901760
    %1839 = vmatpush1.msra.mxu0 %v1838
    %1840 = vmatprep.subr.mxu0 0.0
    %v1841 = vand.u32 %v17, 4294901760
    %v1842 = vsub.f32 %v17, %v1841
    %v1843 = vand.u32 %v1842, 4294901760
    %v1844 = vsub.f32 %v1842, %v1843
    %v1845 = vand.u32 %v1844, 4294901760
    %1846 = vmatpush1.msra.mxu0 %v1845
    %1847 = vmatprep.subr.mxu0 0.0
    %v1848 = vand.u32 %v16, 4294901760
    %v1849 = vsub.f32 %v16, %v1848
    %v1850 = vand.u32 %v1849, 4294901760
    %v1851 = vsub.f32 %v1849, %v1850
    %v1852 = vand.u32 %v1851, 4294901760
    %1853 = vmatpush1.msra.mxu0 %v1852
    %1854 = vmatprep.subr.mxu0 0.0
    %v1855 = vand.u32 %v15, 4294901760
    %v1856 = vsub.f32 %v15, %v1855
    %v1857 = vand.u32 %v1856, 4294901760
    %v1858 = vsub.f32 %v1856, %v1857
    %v1859 = vand.u32 %v1858, 4294901760
    %1860 = vmatpush1.msra.mxu0 %v1859
    %1861 = vmatprep.subr.mxu0 0.0
    %1862 = vmatpush2.msra.mxu0 0.0
    %1863 = vmatprep.subr.mxu0 0.0
    %1864 = vmatpush2.msra.mxu0 0.0
    %1865 = vmatprep.subr.mxu0 0.0
    %1866 = vmatpush2.msra.mxu0 0.0
    %1867 = vmatprep.subr.mxu0 0.0
    %1868 = vmatpush2.msra.mxu0 0.0
    %1869 = vmatprep.subr.mxu0 0.0
    %1870 = vmatpush2.msra.mxu0 0.0
    %1871 = vmatprep.subr.mxu0 0.0
    %1872 = vmatpush2.msra.mxu0 0.0
    %1873 = vmatprep.subr.mxu0 0.0
    %1874 = vmatpush2.msra.mxu0 0.0
    %1875 = vmatprep.subr.mxu0 0.0
    %1876 = vmatpush2.msra.mxu0 0.0
    %1877 = vmatprep.subr.mxu0 0.0
    %1878 = vmatpush2.msra.mxu0 0.0
    %1879 = vmatprep.subr.mxu0 0.0
    %1880 = vmatpush2.msra.mxu0 0.0
    %1881 = vmatprep.subr.mxu0 0.0
    %1882 = vmatpush2.msra.mxu0 0.0
    %1883 = vmatprep.subr.mxu0 0.0
    %1884 = vmatpush2.msra.mxu0 0.0
    %1885 = vmatprep.subr.mxu0 0.0
    %1886 = vmatpush2.msra.mxu0 0.0
    %1887 = vmatprep.subr.mxu0 0.0
    %1888 = vmatpush2.msra.mxu0 0.0
    %1889 = vmatprep.subr.mxu0 0.0
    %1890 = vmatpush2.msra.mxu0 0.0
    %1891 = vmatprep.subr.mxu0 0.0
    %1892 = vmatpush2.msra.mxu0 0.0
    %1893 = vmatprep.mubr.f32.mxu0 0.0
    %v1894 = vand.u32 %v1704, 4294901760
    %1895 = vmatmul.mubr.f32.gmra.mxu0 %v1894
    %v1896 = vpop.f32.mrf.mxu0
    %v1897 = vadd.f32 %v1786, %v1896
    %v1898 = vpop.f32.mrf.mxu0
    %1899 = vdwg.mxu0
    %1900 = vmatprep.subr.mxu0 0.0
    %1901 = vmatpush1.msra.mxu0 0.0
    %1902 = vmatprep.subr.mxu0 0.0
    %1903 = vmatpush1.msra.mxu0 0.0
    %1904 = vmatprep.subr.mxu0 0.0
    %1905 = vmatpush1.msra.mxu0 0.0
    %1906 = vmatprep.subr.mxu0 0.0
    %1907 = vmatpush1.msra.mxu0 0.0
    %1908 = vmatprep.subr.mxu0 0.0
    %1909 = vmatpush1.msra.mxu0 0.0
    %1910 = vmatprep.subr.mxu0 0.0
    %1911 = vmatpush1.msra.mxu0 0.0
    %1912 = vmatprep.subr.mxu0 0.0
    %1913 = vmatpush1.msra.mxu0 0.0
    %1914 = vmatprep.subr.mxu0 0.0
    %1915 = vmatpush1.msra.mxu0 0.0
    %1916 = vmatprep.subr.mxu0 0.0
    %v1917 = vand.u32 %v22, 4294901760
    %v1918 = vsub.f32 %v22, %v1917
    %1919 = vmatpush1.msra.mxu0 %v1918
    %1920 = vmatprep.subr.mxu0 0.0
    %v1921 = vand.u32 %v21, 4294901760
    %v1922 = vsub.f32 %v21, %v1921
    %1923 = vmatpush1.msra.mxu0 %v1922
    %1924 = vmatprep.subr.mxu0 0.0
    %v1925 = vand.u32 %v20, 4294901760
    %v1926 = vsub.f32 %v20, %v1925
    %1927 = vmatpush1.msra.mxu0 %v1926
    %1928 = vmatprep.subr.mxu0 0.0
    %v1929 = vand.u32 %v19, 4294901760
    %v1930 = vsub.f32 %v19, %v1929
    %1931 = vmatpush1.msra.mxu0 %v1930
    %1932 = vmatprep.subr.mxu0 0.0
    %v1933 = vand.u32 %v18, 4294901760
    %v1934 = vsub.f32 %v18, %v1933
    %1935 = vmatpush1.msra.mxu0 %v1934
    %1936 = vmatprep.subr.mxu0 0.0
    %v1937 = vand.u32 %v17, 4294901760
    %v1938 = vsub.f32 %v17, %v1937
    %1939 = vmatpush1.msra.mxu0 %v1938
    %1940 = vmatprep.subr.mxu0 0.0
    %v1941 = vand.u32 %v16, 4294901760
    %v1942 = vsub.f32 %v16, %v1941
    %1943 = vmatpush1.msra.mxu0 %v1942
    %1944 = vmatprep.subr.mxu0 0.0
    %v1945 = vand.u32 %v15, 4294901760
    %v1946 = vsub.f32 %v15, %v1945
    %1947 = vmatpush1.msra.mxu0 %v1946
    %1948 = vmatprep.subr.mxu0 0.0
    %1949 = vmatpush2.msra.mxu0 0.0
    %1950 = vmatprep.subr.mxu0 0.0
    %1951 = vmatpush2.msra.mxu0 0.0
    %1952 = vmatprep.subr.mxu0 0.0
    %1953 = vmatpush2.msra.mxu0 0.0
    %1954 = vmatprep.subr.mxu0 0.0
    %1955 = vmatpush2.msra.mxu0 0.0
    %1956 = vmatprep.subr.mxu0 0.0
    %1957 = vmatpush2.msra.mxu0 0.0
    %1958 = vmatprep.subr.mxu0 0.0
    %1959 = vmatpush2.msra.mxu0 0.0
    %1960 = vmatprep.subr.mxu0 0.0
    %1961 = vmatpush2.msra.mxu0 0.0
    %1962 = vmatprep.subr.mxu0 0.0
    %1963 = vmatpush2.msra.mxu0 0.0
    %1964 = vmatprep.subr.mxu0 0.0
    %1965 = vmatpush2.msra.mxu0 0.0
    %1966 = vmatprep.subr.mxu0 0.0
    %1967 = vmatpush2.msra.mxu0 0.0
    %1968 = vmatprep.subr.mxu0 0.0
    %1969 = vmatpush2.msra.mxu0 0.0
    %1970 = vmatprep.subr.mxu0 0.0
    %1971 = vmatpush2.msra.mxu0 0.0
    %1972 = vmatprep.subr.mxu0 0.0
    %1973 = vmatpush2.msra.mxu0 0.0
    %1974 = vmatprep.subr.mxu0 0.0
    %1975 = vmatpush2.msra.mxu0 0.0
    %1976 = vmatprep.subr.mxu0 0.0
    %1977 = vmatpush2.msra.mxu0 0.0
    %1978 = vmatprep.subr.mxu0 0.0
    %1979 = vmatpush2.msra.mxu0 0.0
    %1980 = vmatprep.mubr.f32.mxu0 0.0
    %v1981 = vand.u32 %v1704, 4294901760
    %v1982 = vsub.f32 %v1704, %v1981
    %1983 = vmatmul.mubr.f32.gmra.mxu0 %v1982
    %v1984 = vpop.f32.mrf.mxu0
    %v1985 = vadd.f32 %v1897, %v1984
    %v1986 = vpop.f32.mrf.mxu0
    %1987 = vdwg.mxu0
    %1988 = vmatprep.subr.mxu0 0.0
    %1989 = vmatpush1.msra.mxu0 0.0
    %1990 = vmatprep.subr.mxu0 0.0
    %1991 = vmatpush1.msra.mxu0 0.0
    %1992 = vmatprep.subr.mxu0 0.0
    %1993 = vmatpush1.msra.mxu0 0.0
    %1994 = vmatprep.subr.mxu0 0.0
    %1995 = vmatpush1.msra.mxu0 0.0
    %1996 = vmatprep.subr.mxu0 0.0
    %1997 = vmatpush1.msra.mxu0 0.0
    %1998 = vmatprep.subr.mxu0 0.0
    %1999 = vmatpush1.msra.mxu0 0.0
    %2000 = vmatprep.subr.mxu0 0.0
    %2001 = vmatpush1.msra.mxu0 0.0
    %2002 = vmatprep.subr.mxu0 0.0
    %2003 = vmatpush1.msra.mxu0 0.0
    %2004 = vmatprep.subr.mxu0 0.0
    %v2005 = vand.u32 %v22, 4294901760
    %2006 = vmatpush1.msra.mxu0 %v2005
    %2007 = vmatprep.subr.mxu0 0.0
    %v2008 = vand.u32 %v21, 4294901760
    %2009 = vmatpush1.msra.mxu0 %v2008
    %2010 = vmatprep.subr.mxu0 0.0
    %v2011 = vand.u32 %v20, 4294901760
    %2012 = vmatpush1.msra.mxu0 %v2011
    %2013 = vmatprep.subr.mxu0 0.0
    %v2014 = vand.u32 %v19, 4294901760
    %2015 = vmatpush1.msra.mxu0 %v2014
    %2016 = vmatprep.subr.mxu0 0.0
    %v2017 = vand.u32 %v18, 4294901760
    %2018 = vmatpush1.msra.mxu0 %v2017
    %2019 = vmatprep.subr.mxu0 0.0
    %v2020 = vand.u32 %v17, 4294901760
    %2021 = vmatpush1.msra.mxu0 %v2020
    %2022 = vmatprep.subr.mxu0 0.0
    %v2023 = vand.u32 %v16, 4294901760
    %2024 = vmatpush1.msra.mxu0 %v2023
    %2025 = vmatprep.subr.mxu0 0.0
    %v2026 = vand.u32 %v15, 4294901760
    %2027 = vmatpush1.msra.mxu0 %v2026
    %2028 = vmatprep.subr.mxu0 0.0
    %2029 = vmatpush2.msra.mxu0 0.0
    %2030 = vmatprep.subr.mxu0 0.0
    %2031 = vmatpush2.msra.mxu0 0.0
    %2032 = vmatprep.subr.mxu0 0.0
    %2033 = vmatpush2.msra.mxu0 0.0
    %2034 = vmatprep.subr.mxu0 0.0
    %2035 = vmatpush2.msra.mxu0 0.0
    %2036 = vmatprep.subr.mxu0 0.0
    %2037 = vmatpush2.msra.mxu0 0.0
    %2038 = vmatprep.subr.mxu0 0.0
    %2039 = vmatpush2.msra.mxu0 0.0
    %2040 = vmatprep.subr.mxu0 0.0
    %2041 = vmatpush2.msra.mxu0 0.0
    %2042 = vmatprep.subr.mxu0 0.0
    %2043 = vmatpush2.msra.mxu0 0.0
    %2044 = vmatprep.subr.mxu0 0.0
    %2045 = vmatpush2.msra.mxu0 0.0
    %2046 = vmatprep.subr.mxu0 0.0
    %2047 = vmatpush2.msra.mxu0 0.0
    %2048 = vmatprep.subr.mxu0 0.0
    %2049 = vmatpush2.msra.mxu0 0.0
    %2050 = vmatprep.subr.mxu0 0.0
    %2051 = vmatpush2.msra.mxu0 0.0
    %2052 = vmatprep.subr.mxu0 0.0
    %2053 = vmatpush2.msra.mxu0 0.0
    %2054 = vmatprep.subr.mxu0 0.0
    %2055 = vmatpush2.msra.mxu0 0.0
    %2056 = vmatprep.subr.mxu0 0.0
    %2057 = vmatpush2.msra.mxu0 0.0
    %2058 = vmatprep.subr.mxu0 0.0
    %2059 = vmatpush2.msra.mxu0 0.0
    %2060 = vmatprep.mubr.f32.mxu0 0.0
    %v2061 = vand.u32 %v1704, 4294901760
    %v2062 = vsub.f32 %v1704, %v2061
    %v2063 = vand.u32 %v2062, 4294901760
    %2064 = vmatmul.mubr.f32.gmra.mxu0 %v2063
    %v2065 = vpop.f32.mrf.mxu0
    %v2066 = vadd.f32 %v1985, %v2065
    %v2067 = vpop.f32.mrf.mxu0
    %2068 = vdwg.mxu0
    %2069 = vmatprep.subr.mxu0 0.0
    %2070 = vmatpush1.msra.mxu0 0.0
    %2071 = vmatprep.subr.mxu0 0.0
    %2072 = vmatpush1.msra.mxu0 0.0
    %2073 = vmatprep.subr.mxu0 0.0
    %2074 = vmatpush1.msra.mxu0 0.0
    %2075 = vmatprep.subr.mxu0 0.0
    %2076 = vmatpush1.msra.mxu0 0.0
    %2077 = vmatprep.subr.mxu0 0.0
    %2078 = vmatpush1.msra.mxu0 0.0
    %2079 = vmatprep.subr.mxu0 0.0
    %2080 = vmatpush1.msra.mxu0 0.0
    %2081 = vmatprep.subr.mxu0 0.0
    %2082 = vmatpush1.msra.mxu0 0.0
    %2083 = vmatprep.subr.mxu0 0.0
    %2084 = vmatpush1.msra.mxu0 0.0
    %2085 = vmatprep.subr.mxu0 0.0
    %v2086 = vand.u32 %v22, 4294901760
    %v2087 = vsub.f32 %v22, %v2086
    %v2088 = vand.u32 %v2087, 4294901760
    %2089 = vmatpush1.msra.mxu0 %v2088
    %2090 = vmatprep.subr.mxu0 0.0
    %v2091 = vand.u32 %v21, 4294901760
    %v2092 = vsub.f32 %v21, %v2091
    %v2093 = vand.u32 %v2092, 4294901760
    %2094 = vmatpush1.msra.mxu0 %v2093
    %2095 = vmatprep.subr.mxu0 0.0
    %v2096 = vand.u32 %v20, 4294901760
    %v2097 = vsub.f32 %v20, %v2096
    %v2098 = vand.u32 %v2097, 4294901760
    %2099 = vmatpush1.msra.mxu0 %v2098
    %2100 = vmatprep.subr.mxu0 0.0
    %v2101 = vand.u32 %v19, 4294901760
    %v2102 = vsub.f32 %v19, %v2101
    %v2103 = vand.u32 %v2102, 4294901760
    %2104 = vmatpush1.msra.mxu0 %v2103
    %2105 = vmatprep.subr.mxu0 0.0
    %v2106 = vand.u32 %v18, 4294901760
    %v2107 = vsub.f32 %v18, %v2106
    %v2108 = vand.u32 %v2107, 4294901760
    %2109 = vmatpush1.msra.mxu0 %v2108
    %2110 = vmatprep.subr.mxu0 0.0
    %v2111 = vand.u32 %v17, 4294901760
    %v2112 = vsub.f32 %v17, %v2111
    %v2113 = vand.u32 %v2112, 4294901760
    %2114 = vmatpush1.msra.mxu0 %v2113
    %2115 = vmatprep.subr.mxu0 0.0
    %v2116 = vand.u32 %v16, 4294901760
    %v2117 = vsub.f32 %v16, %v2116
    %v2118 = vand.u32 %v2117, 4294901760
    %2119 = vmatpush1.msra.mxu0 %v2118
    %2120 = vmatprep.subr.mxu0 0.0
    %v2121 = vand.u32 %v15, 4294901760
    %v2122 = vsub.f32 %v15, %v2121
    %v2123 = vand.u32 %v2122, 4294901760
    %2124 = vmatpush1.msra.mxu0 %v2123
    %2125 = vmatprep.subr.mxu0 0.0
    %2126 = vmatpush2.msra.mxu0 0.0
    %2127 = vmatprep.subr.mxu0 0.0
    %2128 = vmatpush2.msra.mxu0 0.0
    %2129 = vmatprep.subr.mxu0 0.0
    %2130 = vmatpush2.msra.mxu0 0.0
    %2131 = vmatprep.subr.mxu0 0.0
    %2132 = vmatpush2.msra.mxu0 0.0
    %2133 = vmatprep.subr.mxu0 0.0
    %2134 = vmatpush2.msra.mxu0 0.0
    %2135 = vmatprep.subr.mxu0 0.0
    %2136 = vmatpush2.msra.mxu0 0.0
    %2137 = vmatprep.subr.mxu0 0.0
    %2138 = vmatpush2.msra.mxu0 0.0
    %2139 = vmatprep.subr.mxu0 0.0
    %2140 = vmatpush2.msra.mxu0 0.0
    %2141 = vmatprep.subr.mxu0 0.0
    %2142 = vmatpush2.msra.mxu0 0.0
    %2143 = vmatprep.subr.mxu0 0.0
    %2144 = vmatpush2.msra.mxu0 0.0
    %2145 = vmatprep.subr.mxu0 0.0
    %2146 = vmatpush2.msra.mxu0 0.0
    %2147 = vmatprep.subr.mxu0 0.0
    %2148 = vmatpush2.msra.mxu0 0.0
    %2149 = vmatprep.subr.mxu0 0.0
    %2150 = vmatpush2.msra.mxu0 0.0
    %2151 = vmatprep.subr.mxu0 0.0
    %2152 = vmatpush2.msra.mxu0 0.0
    %2153 = vmatprep.subr.mxu0 0.0
    %2154 = vmatpush2.msra.mxu0 0.0
    %2155 = vmatprep.subr.mxu0 0.0
    %2156 = vmatpush2.msra.mxu0 0.0
    %2157 = vmatprep.mubr.f32.mxu0 0.0
    %v2158 = vand.u32 %v1704, 4294901760
    %2159 = vmatmul.mubr.f32.gmra.mxu0 %v2158
    %v2160 = vpop.f32.mrf.mxu0
    %v2161 = vadd.f32 %v2066, %v2160
    %v2162 = vpop.f32.mrf.mxu0
    %2163 = vdwg.mxu0
    %2164 = vmatprep.subr.mxu0 0.0
    %2165 = vmatpush1.msra.mxu0 0.0
    %2166 = vmatprep.subr.mxu0 0.0
    %2167 = vmatpush1.msra.mxu0 0.0
    %2168 = vmatprep.subr.mxu0 0.0
    %2169 = vmatpush1.msra.mxu0 0.0
    %2170 = vmatprep.subr.mxu0 0.0
    %2171 = vmatpush1.msra.mxu0 0.0
    %2172 = vmatprep.subr.mxu0 0.0
    %2173 = vmatpush1.msra.mxu0 0.0
    %2174 = vmatprep.subr.mxu0 0.0
    %2175 = vmatpush1.msra.mxu0 0.0
    %2176 = vmatprep.subr.mxu0 0.0
    %2177 = vmatpush1.msra.mxu0 0.0
    %2178 = vmatprep.subr.mxu0 0.0
    %2179 = vmatpush1.msra.mxu0 0.0
    %2180 = vmatprep.subr.mxu0 0.0
    %v2181 = vand.u32 %v22, 4294901760
    %2182 = vmatpush1.msra.mxu0 %v2181
    %2183 = vmatprep.subr.mxu0 0.0
    %v2184 = vand.u32 %v21, 4294901760
    %2185 = vmatpush1.msra.mxu0 %v2184
    %2186 = vmatprep.subr.mxu0 0.0
    %v2187 = vand.u32 %v20, 4294901760
    %2188 = vmatpush1.msra.mxu0 %v2187
    %2189 = vmatprep.subr.mxu0 0.0
    %v2190 = vand.u32 %v19, 4294901760
    %2191 = vmatpush1.msra.mxu0 %v2190
    %2192 = vmatprep.subr.mxu0 0.0
    %v2193 = vand.u32 %v18, 4294901760
    %2194 = vmatpush1.msra.mxu0 %v2193
    %2195 = vmatprep.subr.mxu0 0.0
    %v2196 = vand.u32 %v17, 4294901760
    %2197 = vmatpush1.msra.mxu0 %v2196
    %2198 = vmatprep.subr.mxu0 0.0
    %v2199 = vand.u32 %v16, 4294901760
    %2200 = vmatpush1.msra.mxu0 %v2199
    %2201 = vmatprep.subr.mxu0 0.0
    %v2202 = vand.u32 %v15, 4294901760
    %2203 = vmatpush1.msra.mxu0 %v2202
    %2204 = vmatprep.subr.mxu0 0.0
    %2205 = vmatpush2.msra.mxu0 0.0
    %2206 = vmatprep.subr.mxu0 0.0
    %2207 = vmatpush2.msra.mxu0 0.0
    %2208 = vmatprep.subr.mxu0 0.0
    %2209 = vmatpush2.msra.mxu0 0.0
    %2210 = vmatprep.subr.mxu0 0.0
    %2211 = vmatpush2.msra.mxu0 0.0
    %2212 = vmatprep.subr.mxu0 0.0
    %2213 = vmatpush2.msra.mxu0 0.0
    %2214 = vmatprep.subr.mxu0 0.0
    %2215 = vmatpush2.msra.mxu0 0.0
    %2216 = vmatprep.subr.mxu0 0.0
    %2217 = vmatpush2.msra.mxu0 0.0
    %2218 = vmatprep.subr.mxu0 0.0
    %2219 = vmatpush2.msra.mxu0 0.0
    %2220 = vmatprep.subr.mxu0 0.0
    %2221 = vmatpush2.msra.mxu0 0.0
    %2222 = vmatprep.subr.mxu0 0.0
    %2223 = vmatpush2.msra.mxu0 0.0
    %2224 = vmatprep.subr.mxu0 0.0
    %2225 = vmatpush2.msra.mxu0 0.0
    %2226 = vmatprep.subr.mxu0 0.0
    %2227 = vmatpush2.msra.mxu0 0.0
    %2228 = vmatprep.subr.mxu0 0.0
    %2229 = vmatpush2.msra.mxu0 0.0
    %2230 = vmatprep.subr.mxu0 0.0
    %2231 = vmatpush2.msra.mxu0 0.0
    %2232 = vmatprep.subr.mxu0 0.0
    %2233 = vmatpush2.msra.mxu0 0.0
    %2234 = vmatprep.subr.mxu0 0.0
    %2235 = vmatpush2.msra.mxu0 0.0
    %2236 = vmatprep.mubr.f32.mxu0 0.0
    %v2237 = vand.u32 %v1704, 4294901760
    %2238 = vmatmul.mubr.f32.gmra.mxu0 %v2237
    %v2239 = vpop.f32.mrf.mxu0
    %v2240 = vadd.f32 %v2161, %v2239
    %v2241 = vpop.f32.mrf.mxu0
    %2242 = vdwg.mxu0
    %v2243 = vmul.f32 %v2240, 5.656854
    %2244 = vrot.lane.b32.xlu0 %v23, 32
    %v2245 = vpop.permute.xlu0 %2244
    %v2247 = vadd.f32 %v2243, %v2245
    %2249 = vrot.lane.b32.xlu0 %v2247, 96
    %v2250 = vpop.permute.xlu0 %2249
    %vm2252 = vcmask 1044224
    %2253 = vst.msk [vmem:[#allocation2] sm:$0xf] %vm2252, %v2250
    // Predicated region
    $region14: #{tpu_custom_call.1} parent=1 // pred_check
      _
    $region15: #{tpu_custom_call.1} parent=1 // pred_check_branch
      %2255 = sbr.rel (0) target = $region17
    $region16: #{tpu_custom_call.1} parent=1 // pred_region
      %s2257 = ssub.s32 64, 64
      %2258 = vsyncadd [#allocation3], %s2257
      %s2260 = sshll.u32 [#allocation2], 4
      %s2261 = int_to_ptr.vmem [resolvable:$true] %s2260
      %2263 = dma.vmem_to_hbm [thread:$0]  %s2261, 64, %s3, [#allocation3]
    $region17: #{tpu_custom_call.1} parent=1 // pred_fallthru
      _
    // Predicated region
    $region18: #{tpu_custom_call.1} parent=1 // pred_check
      _
    $region19: #{tpu_custom_call.1} parent=1 // pred_check_branch
      %2265 = sbr.rel (0) target = $region21
    $region20: #{tpu_custom_call.1} parent=1 // pred_region
      %2266 = dma.done [#allocation3], 64
    $region21: #{tpu_custom_call.1} parent=1 // pred_fallthru
      _
    %2267 = vsyncpa [#allocation3], 1

</llo_original>
